<compile_context>
chip_gen: v7x
topology: tpu7x:2x2x1
jax: 0.10.0
libtpu: 0.0.40
codegen_flags: <defaults>
</compile_context>

<pallas_src>
import math

import numpy as np

import jax
import jax.numpy as jnp
from jax import lax
from jax.experimental import pallas as pl
from jax.experimental.pallas import tpu as pltpu

# ---------------------------------------------------------------------------
# static configuration
# ---------------------------------------------------------------------------
B = 2             # batch
S = 16            # sequence length
E = 128           # embed_dim
H = 8             # num_heads
DH = E // H       # head dim (16)
BS = B * S        # fused row count for the projection / FFN matmuls (32)
BHS = B * H * S   # block-diagonal K/V row count (256)
INNER = 512       # ParallelGatedMLP inner: round_up(int(2*128*4/3)=341, 256)
EPS_IN = 1e-5     # InstanceNorm eps
NEG_BIG = -1e30   # additive bias that kills cross-batch attention

# ---------------------------------------------------------------------------
# precomputed constant masks (feedback: don't rebuild them with iota chains)
#   KV_MASK[c, e] = 1  iff embed dim e belongs to the head of K/V slot c
#                      (c = b*H*S + h*S + j  ->  head h = (c // S) % H)
#   QBIAS[i, c]   = 0 if query row i (batch i // S) and slot c (batch
#                   c // (H*S)) are in the same batch, else -1e30.
# KV_MASK is reused as the operand of the per-head softmax-denominator matmul.
# ---------------------------------------------------------------------------
_col = np.arange(BHS)
_lane = np.arange(E)
_row = np.arange(BS)
KV_MASK = jnp.asarray(
    (((_col[:, None] // S) % H) == (_lane[None, :] // DH)).astype(np.float32))
QBIAS = jnp.asarray(
    np.where((_row[:, None] // S) == (_col[None, :] // (H * S)),
             0.0, NEG_BIG).astype(np.float32))


def _transformer_block_kernel(
    x_ref,        # (B, S, E)        f32
    wqkv_ref,     # (E, 3E)          bf16  (q|k|v packed, in_proj order)
    bqkv_ref,     # (1, 3E)          f32
    wo_ref,       # (E, E)           bf16
    bo_ref,       # (1, E)           f32
    g1_ref,       # (1, E)           f32   InstanceNorm-1 weight (affine=True)
    b1_ref,       # (1, E)           f32   InstanceNorm-1 bias
    kvmask_ref,   # (B*H*S, E)       f32   constant
    qbias_ref,    # (B*S, B*H*S)     f32   constant
    g2_ref,       # (1, E)           f32
    b2_ref,       # (1, E)           f32
    w12_hbm,      # (E, 2*INNER)     bf16  HBM (pl.ANY) -> manual DMA
    w3_hbm,       # (INNER, E)       bf16  HBM (pl.ANY) -> manual DMA
    out_ref,      # (B, S, E)        f32
    w12_vmem,     # (E, 2*INNER)     bf16  VMEM scratch
    w3_vmem,      # (INNER, E)       bf16  VMEM scratch
    dma_sem,      # DMA semaphores (2,)
):
    f32 = jnp.float32
    bf16 = jnp.bfloat16

    # ---- kick off the FFN weight DMAs; they overlap QKV + attention + norm1
    cp12 = pltpu.make_async_copy(w12_hbm, w12_vmem, dma_sem.at[0])
    cp3 = pltpu.make_async_copy(w3_hbm, w3_vmem, dma_sem.at[1])
    cp12.start()
    cp3.start()

    x = x_ref[...].reshape(BS, E)                       # (32, 128) all batches

    # ---------------- fused QKV projection (bf16 MXU inputs, f32 acc) -------
    qkv = jnp.dot(x.astype(bf16), wqkv_ref[...],
                  preferred_element_type=f32) + bqkv_ref[...]   # (32, 384)
    q = qkv[:, :E] * (1.0 / math.sqrt(DH))              # fold scale into q once
    k = qkv[:, E:2 * E]
    v = qkv[:, 2 * E:]

    # ---------------- block-diagonal multi-head attention (all batches) -----
    # K/V replicated H times per batch (sublane-only broadcast+reshape, no
    # concatenates), masked so slot c only carries its head's embed dims.
    kvm = kvmask_ref[...]                                          # (256, 128)
    krep = jnp.broadcast_to(k.reshape(B, 1, S, E), (B, H, S, E)).reshape(BHS, E)
    vrep = jnp.broadcast_to(v.reshape(B, 1, S, E), (B, H, S, E)).reshape(BHS, E)
    kb = krep * kvm                                                # (256, 128)
    vb = vrep * kvm                                                # (256, 128)

    # scores[i, b*H*S + h*S + j] = <q_h[i], k_h[b, j]>  (contract last dims)
    s = lax.dot_general(q, kb, (((1,), (1,)), ((), ())),
                        preferred_element_type=f32)                # (32, 256)
    s = s + qbias_ref[...]                 # -1e30 on cross-batch columns
    s = s - jnp.max(s, axis=-1, keepdims=True)
    p = jnp.exp(s)                         # cross-batch entries underflow to 0

    # Unnormalized context and per-head softmax sums, each one MXU matmul.
    ctx = jnp.dot(p, vb, preferred_element_type=f32)               # (32, 128)
    den = jnp.dot(p, kvm, preferred_element_type=f32)              # (32, 128)
    attn = ctx / jnp.maximum(den, 1e-30)   # exact division; eps guards underflow

    attn_out = jnp.dot(attn.astype(bf16), wo_ref[...],
                       preferred_element_type=f32) + bo_ref[...]

    # ---------------- residual + InstanceNorm1d (over sequence axis) --------
    y = (x + attn_out).reshape(B, S, E)
    mean1 = jnp.mean(y, axis=1, keepdims=True)                     # (B, 1, E)
    var1 = jnp.mean((y - mean1) ** 2, axis=1, keepdims=True)       # biased var
    h1 = (y - mean1) * lax.rsqrt(var1 + EPS_IN) * g1_ref[...] + b1_ref[...]
    h1f = h1.reshape(BS, E)

    # ---------------- ParallelGatedMLP (silu gate, no biases) ---------------
    cp12.wait()                                   # w1|w2 now resident in VMEM
    z = jnp.dot(h1f.astype(bf16), w12_vmem[...],
                preferred_element_type=f32)                        # (32, 1024)
    z1 = z[:, :INNER]
    z2 = z[:, INNER:]
    gate = z1 / (1.0 + jnp.exp(-z1))              # silu(z1), exact sigmoid
    cp3.wait()
    ff = jnp.dot((gate * z2).astype(bf16), w3_vmem[...],
                 preferred_element_type=f32)                       # (32, 128)

    # ---------------- residual + InstanceNorm1d ------------------------------
    y2 = (h1f + ff).reshape(B, S, E)
    mean2 = jnp.mean(y2, axis=1, keepdims=True)
    var2 = jnp.mean((y2 - mean2) ** 2, axis=1, keepdims=True)
    out_ref[...] = (y2 - mean2) * lax.rsqrt(var2 + EPS_IN) * g2_ref[...] + b2_ref[...]


def transformer_block(x, params):
    """x: (B, S, E) float32 -> (B, S, E) float32."""
    def full(shape):
        return pl.BlockSpec(shape, lambda i, _n=len(shape): (0,) * _n)

    in_specs = [
        pl.BlockSpec((B, S, E), lambda i: (0, 0, 0)),   # x (all batches at once)
        full((E, 3 * E)),                               # wqkv (bf16)
        full((1, 3 * E)),                               # bqkv
        full((E, E)),                                   # wo   (bf16)
        full((1, E)),                                   # bo
        full((1, E)),                                   # g1
        full((1, E)),                                   # b1
        full((BHS, E)),                                 # kv_mask (const)
        full((BS, BHS)),                                # qbias   (const)
        full((1, E)),                                   # g2
        full((1, E)),                                   # b2
        pl.BlockSpec(memory_space=pl.ANY),              # w12 (bf16, manual DMA)
        pl.BlockSpec(memory_space=pl.ANY),              # w3  (bf16, manual DMA)
    ]
    out_spec = pl.BlockSpec((B, S, E), lambda i: (0, 0, 0))

    # Single grid step: all B*S rows fused into every matmul, weights DMA'd
    # exactly once, FFN weights overlapped with attention via manual DMA.
    return pl.pallas_call(
        _transformer_block_kernel,
        out_shape=jax.ShapeDtypeStruct((B, S, E), jnp.float32),
        grid_spec=pltpu.PrefetchScalarGridSpec(
            num_scalar_prefetch=0,
            grid=(1,),
            in_specs=in_specs,
            out_specs=out_spec,
            scratch_shapes=[
                pltpu.VMEM((E, 2 * INNER), jnp.bfloat16),   # w1|w2 landing buffer
                pltpu.VMEM((INNER, E), jnp.bfloat16),       # w3 landing buffer
                pltpu.SemaphoreType.DMA((2,)),
            ],
        ),
        compiler_params=pltpu.CompilerParams(
            dimension_semantics=("arbitrary",)),
    )(
        x,
        params["wqkv"], params["bqkv"],
        params["wo"], params["bo"],
        params["g1"], params["b1"],
        KV_MASK, QBIAS,
        params["g2"], params["b2"],
        params["w12"], params["w3"],
    )


# ---------------------------------------------------------------------------
# Pure-JAX reference: the exact TransformerBlock forward (standard per-head
# attention, post-norm InstanceNorm1d over the sequence, gated silu MLP),
# evaluated in the SAME mixed precision as the kernel: every weight matmul
# takes bf16 operands with f32 accumulation, while attention internals,
# softmax, norms and residuals are f32.  This is the numerics contract of the
# kernel, so the tolerance below only covers accumulation-order and
# transcendental rounding.  (Relative to a pure-f32 evaluation, the bf16 MXU
# feed introduces ~1e-2 deviation -- the standard trade the perf review asked
# for.)
# ---------------------------------------------------------------------------
def reference(x, p):
    f32 = jnp.float32
    bf16 = jnp.bfloat16

    def mm(a, w):   # bf16 MXU inputs, f32 accumulation (matches the kernel)
        return jnp.dot(a.astype(bf16), w.astype(bf16), preferred_element_type=f32)

    def instance_norm(y, g, b):
        mean = jnp.mean(y, axis=1, keepdims=True)                  # over seq
        var = jnp.mean((y - mean) ** 2, axis=1, keepdims=True)     # biased
        return (y - mean) * lax.rsqrt(var + EPS_IN) * g + b

    qkv = mm(x, p["wqkv"]) + p["bqkv"]                             # (B, S, 3E)
    q, k, v = jnp.split(qkv, 3, axis=-1)
    q = q.reshape(B, S, H, DH).transpose(0, 2, 1, 3)
    k = k.reshape(B, S, H, DH).transpose(0, 2, 1, 3)
    v = v.reshape(B, S, H, DH).transpose(0, 2, 1, 3)
    s = jnp.einsum("bhqd,bhkd->bhqk", q, k) / math.sqrt(DH)
    p_attn = jax.nn.softmax(s, axis=-1)
    ctx = jnp.einsum("bhqk,bhkd->bhqd", p_attn, v)
    ctx = ctx.transpose(0, 2, 1, 3).reshape(B, S, E)
    attn_out = mm(ctx, p["wo"]) + p["bo"]

    h1 = instance_norm(x + attn_out, p["g1"], p["b1"])
    z = mm(h1, p["w12"])
    z1, z2 = z[..., :INNER], z[..., INNER:]
    gate = z1 / (1.0 + jnp.exp(-z1))                               # silu
    ff = mm(gate * z2, p["w3"])
    h2 = instance_norm(h1 + ff, p["g2"], p["b2"])
    return h2


def make_params(key):
    ks = jax.random.split(key, 10)
    bf16 = jnp.bfloat16
    sc = lambda fan_in: 1.0 / math.sqrt(fan_in)
    # Large matmul weights are stored in bf16 (halves the binding HBM weight
    # traffic) and consumed directly by the MXU; biases / norm affine params
    # stay f32.  Norm affine params are mildly perturbed from the (1, 0)
    # PyTorch init so the affine path is actually exercised by the check.
    return {
        # in_proj weight/bias packed as [q | k | v].
        "wqkv": (jax.random.normal(ks[0], (E, 3 * E), jnp.float32) * sc(E)).astype(bf16),
        "bqkv": jax.random.normal(ks[1], (1, 3 * E), jnp.float32) * 0.02,
        "wo":   (jax.random.normal(ks[2], (E, E), jnp.float32) * sc(E)).astype(bf16),
        "bo":   jax.random.normal(ks[3], (1, E), jnp.float32) * 0.02,
        "g1":   1.0 + 0.1 * jax.random.normal(ks[4], (1, E), jnp.float32),
        "b1":   0.05 * jax.random.normal(ks[5], (1, E), jnp.float32),
        # ParallelGatedMLP: l1 and l2 packed side by side -> one matmul.
        "w12":  (jax.random.normal(ks[6], (E, 2 * INNER), jnp.float32) * sc(E)).astype(bf16),
        "w3":   (jax.random.normal(ks[7], (INNER, E), jnp.float32) * sc(INNER)).astype(bf16),
        "g2":   1.0 + 0.1 * jax.random.normal(ks[8], (1, E), jnp.float32),
        "b2":   0.05 * jax.random.normal(ks[9], (1, E), jnp.float32),
    }


if __name__ == "__main__":
    key = jax.random.PRNGKey(0)
    kx, kp = jax.random.split(key)
    x = jax.random.normal(kx, (B, S, E), jnp.float32)
    params = make_params(kp)

    out = jax.block_until_ready(transformer_block(x, params))
    ref = reference(x, params)

    assert out.shape == (B, S, E)
    assert bool(jnp.isfinite(out).all()), "non-finite values in kernel output"
    max_err = float(jnp.max(jnp.abs(out - ref)))
    # Kernel and reference use identical precision (bf16 matmul inputs, f32
    # accumulation, f32 softmax/norms); remaining differences are accumulation
    # order and exp/rsqrt rounding only.
    assert max_err <= 2e-3, f"mismatch vs reference: max abs err {max_err}"

    print("KERNEL_OK")
</pallas_src>

<mosaic_0001>
module attributes {stable_mosaic.version = 11 : i64} {
  func.func @_transformer_block_kernel(%arg0: i32, %arg1: memref<2x16x128xf32, #tpu.memory_space<vmem>>, %arg2: memref<128x384xbf16, #tpu.memory_space<vmem>>, %arg3: memref<1x384xf32, #tpu.memory_space<vmem>>, %arg4: memref<128x128xbf16, #tpu.memory_space<vmem>>, %arg5: memref<1x128xf32, #tpu.memory_space<vmem>>, %arg6: memref<1x128xf32, #tpu.memory_space<vmem>>, %arg7: memref<1x128xf32, #tpu.memory_space<vmem>>, %arg8: memref<256x128xf32, #tpu.memory_space<vmem>>, %arg9: memref<32x256xf32, #tpu.memory_space<vmem>>, %arg10: memref<1x128xf32, #tpu.memory_space<vmem>>, %arg11: memref<1x128xf32, #tpu.memory_space<vmem>>, %arg12: memref<128x1024xbf16, #tpu.memory_space<any>>, %arg13: memref<512x128xbf16, #tpu.memory_space<any>>, %arg14: memref<2x16x128xf32, #tpu.memory_space<vmem>>, %arg15: memref<128x1024xbf16, #tpu.memory_space<vmem>>, %arg16: memref<512x128xbf16, #tpu.memory_space<vmem>>, %arg17: memref<2x!tpu.dma_semaphore, #tpu.memory_space<semaphore_mem>>) attributes {dimension_semantics = [#tpu.dimension_semantics<arbitrary>], iteration_bounds = array<i64: 1>, scalar_prefetch = 0 : i64, scratch_operands = 3 : i64, tpu.core_type = #tpu.core_type<tc>, window_params = [{pipeline_mode = #tpu.pipeline_mode<synchronous>, transform_indices = @transform_0, window_bounds = array<i64: 2, 16, 128>}, {pipeline_mode = #tpu.pipeline_mode<synchronous>, transform_indices = @transform_1, window_bounds = array<i64: 128, 384>}, {pipeline_mode = #tpu.pipeline_mode<synchronous>, transform_indices = @transform_2, window_bounds = array<i64: 1, 384>}, {pipeline_mode = #tpu.pipeline_mode<synchronous>, transform_indices = @transform_3, window_bounds = array<i64: 128, 128>}, {pipeline_mode = #tpu.pipeline_mode<synchronous>, transform_indices = @transform_4, window_bounds = array<i64: 1, 128>}, {pipeline_mode = #tpu.pipeline_mode<synchronous>, transform_indices = @transform_5, window_bounds = array<i64: 1, 128>}, {pipeline_mode = #tpu.pipeline_mode<synchronous>, transform_indices = @transform_6, window_bounds = array<i64: 1, 128>}, {pipeline_mode = #tpu.pipeline_mode<synchronous>, transform_indices = @transform_7, window_bounds = array<i64: 256, 128>}, {pipeline_mode = #tpu.pipeline_mode<synchronous>, transform_indices = @transform_8, window_bounds = array<i64: 32, 256>}, {pipeline_mode = #tpu.pipeline_mode<synchronous>, transform_indices = @transform_9, window_bounds = array<i64: 1, 128>}, {pipeline_mode = #tpu.pipeline_mode<synchronous>, transform_indices = @transform_10, window_bounds = array<i64: 1, 128>}, {}, {}, {pipeline_mode = #tpu.pipeline_mode<synchronous>, transform_indices = @transform_13, window_bounds = array<i64: 2, 16, 128>}]} {
    %c0_i32 = arith.constant 0 : i32
    %0 = tpu.memref_slice %arg17[%c0_i32] : memref<2x!tpu.dma_semaphore, #tpu.memory_space<semaphore_mem>> -> memref<1x!tpu.dma_semaphore, #tpu.memory_space<semaphore_mem>>
    %1 = tpu.memref_squeeze %0 : memref<1x!tpu.dma_semaphore, #tpu.memory_space<semaphore_mem>> -> memref<!tpu.dma_semaphore, #tpu.memory_space<semaphore_mem>>
    tpu.enqueue_dma source(%arg12 : memref<128x1024xbf16, #tpu.memory_space<any>>) target(%arg15 : memref<128x1024xbf16, #tpu.memory_space<vmem>>) target_semaphore(%1 : memref<!tpu.dma_semaphore, #tpu.memory_space<semaphore_mem>>)
    %c1_i32 = arith.constant 1 : i32
    %2 = tpu.memref_slice %arg17[%c1_i32] : memref<2x!tpu.dma_semaphore, #tpu.memory_space<semaphore_mem>> -> memref<1x!tpu.dma_semaphore, #tpu.memory_space<semaphore_mem>>
    %3 = tpu.memref_squeeze %2 : memref<1x!tpu.dma_semaphore, #tpu.memory_space<semaphore_mem>> -> memref<!tpu.dma_semaphore, #tpu.memory_space<semaphore_mem>>
    tpu.enqueue_dma source(%arg13 : memref<512x128xbf16, #tpu.memory_space<any>>) target(%arg16 : memref<512x128xbf16, #tpu.memory_space<vmem>>) target_semaphore(%3 : memref<!tpu.dma_semaphore, #tpu.memory_space<semaphore_mem>>)
    %c0 = arith.constant 0 : index
    %c0_0 = arith.constant 0 : index
    %c0_1 = arith.constant 0 : index
    %4 = vector.load %arg1[%c0, %c0_0, %c0_1] : memref<2x16x128xf32, #tpu.memory_space<vmem>>, vector<2x16x128xf32>
    %5 = vector.shape_cast %4 : vector<2x16x128xf32> to vector<32x128xf32>
    %6 = arith.truncf %5 : vector<32x128xf32> to vector<32x128xbf16>
    %c0_2 = arith.constant 0 : index
    %c0_3 = arith.constant 0 : index
    %7 = vector.load %arg2[%c0_2, %c0_3] : memref<128x384xbf16, #tpu.memory_space<vmem>>, vector<128x384xbf16>
    %cst = arith.constant dense<0.000000e+00> : vector<32x384xf32>
    %8 = tpu.matmul %6, %7, %cst {dimension_numbers = #tpu.dot_dimension_numbers<[1], [0], [0], [1], [0, 0, 1, 1], [], []>} : vector<32x128xbf16>, vector<128x384xbf16>, vector<32x384xf32> -> vector<32x384xf32>
    %c0_4 = arith.constant 0 : index
    %c0_5 = arith.constant 0 : index
    %9 = vector.load %arg3[%c0_4, %c0_5] : memref<1x384xf32, #tpu.memory_space<vmem>>, vector<1x384xf32>
    %10 = vector.broadcast %9 : vector<1x384xf32> to vector<32x384xf32>
    %11 = arith.addf %8, %10 : vector<32x384xf32>
    %12 = vector.extract_strided_slice %11 {offsets = [0, 0], sizes = [32, 128], strides = [1, 1]} : vector<32x384xf32> to vector<32x128xf32>
    %cst_6 = arith.constant 2.500000e-01 : f32
    %13 = vector.broadcast %cst_6 : f32 to vector<32x128xf32>
    %14 = arith.mulf %12, %13 : vector<32x128xf32>
    %15 = vector.extract_strided_slice %11 {offsets = [0, 128], sizes = [32, 128], strides = [1, 1]} : vector<32x384xf32> to vector<32x128xf32>
    %16 = vector.extract_strided_slice %11 {offsets = [0, 256], sizes = [32, 128], strides = [1, 1]} : vector<32x384xf32> to vector<32x128xf32>
    %c0_7 = arith.constant 0 : index
    %c0_8 = arith.constant 0 : index
    %17 = vector.load %arg8[%c0_7, %c0_8] : memref<256x128xf32, #tpu.memory_space<vmem>>, vector<256x128xf32>
    %18 = vector.shape_cast %15 : vector<32x128xf32> to vector<2x1x16x128xf32>
    %19 = vector.shape_cast %18 : vector<2x1x16x128xf32> to vector<2x1x16x128xf32>
    %20 = vector.broadcast %19 : vector<2x1x16x128xf32> to vector<2x8x16x128xf32>
    %21 = vector.shape_cast %20 : vector<2x8x16x128xf32> to vector<256x128xf32>
    %22 = vector.shape_cast %16 : vector<32x128xf32> to vector<2x1x16x128xf32>
    %23 = vector.shape_cast %22 : vector<2x1x16x128xf32> to vector<2x1x16x128xf32>
    %24 = vector.broadcast %23 : vector<2x1x16x128xf32> to vector<2x8x16x128xf32>
    %25 = vector.shape_cast %24 : vector<2x8x16x128xf32> to vector<256x128xf32>
    %26 = arith.mulf %21, %17 : vector<256x128xf32>
    %27 = arith.mulf %25, %17 : vector<256x128xf32>
    %cst_9 = arith.constant dense<0.000000e+00> : vector<32x256xf32>
    %28 = tpu.matmul %14, %26, %cst_9 {dimension_numbers = #tpu.dot_dimension_numbers<[1], [1], [0], [0], [0, 0, 1, 0], [], []>} : vector<32x128xf32>, vector<256x128xf32>, vector<32x256xf32> -> vector<32x256xf32>
    %c0_10 = arith.constant 0 : index
    %c0_11 = arith.constant 0 : index
    %29 = vector.load %arg9[%c0_10, %c0_11] : memref<32x256xf32, #tpu.memory_space<vmem>>, vector<32x256xf32>
    %30 = arith.addf %28, %29 : vector<32x256xf32>
    %cst_12 = arith.constant dense<0xFF800000> : vector<32xf32>
    %31 = vector.multi_reduction <maximumf>, %30, %cst_12 [1] : vector<32x256xf32> to vector<32xf32>
    %32 = vector.shape_cast %31 : vector<32xf32> to vector<32x1xf32>
    %33 = vector.broadcast %32 : vector<32x1xf32> to vector<32x256xf32>
    %34 = arith.subf %30, %33 : vector<32x256xf32>
    %35 = math.exp %34 : vector<32x256xf32>
    %cst_13 = arith.constant dense<0.000000e+00> : vector<32x128xf32>
    %36 = tpu.matmul %35, %27, %cst_13 {dimension_numbers = #tpu.dot_dimension_numbers<[1], [0], [0], [1], [0, 0, 1, 1], [], []>} : vector<32x256xf32>, vector<256x128xf32>, vector<32x128xf32> -> vector<32x128xf32>
    %cst_14 = arith.constant dense<0.000000e+00> : vector<32x128xf32>
    %37 = tpu.matmul %35, %17, %cst_14 {dimension_numbers = #tpu.dot_dimension_numbers<[1], [0], [0], [1], [0, 0, 1, 1], [], []>} : vector<32x256xf32>, vector<256x128xf32>, vector<32x128xf32> -> vector<32x128xf32>
    %cst_15 = arith.constant 1.000000e-30 : f32
    %38 = vector.broadcast %cst_15 : f32 to vector<32x128xf32>
    %39 = arith.maximumf %37, %38 : vector<32x128xf32>
    %40 = arith.divf %36, %39 : vector<32x128xf32>
    %41 = arith.truncf %40 : vector<32x128xf32> to vector<32x128xbf16>
    %c0_16 = arith.constant 0 : index
    %c0_17 = arith.constant 0 : index
    %42 = vector.load %arg4[%c0_16, %c0_17] : memref<128x128xbf16, #tpu.memory_space<vmem>>, vector<128x128xbf16>
    %cst_18 = arith.constant dense<0.000000e+00> : vector<32x128xf32>
    %43 = tpu.matmul %41, %42, %cst_18 {dimension_numbers = #tpu.dot_dimension_numbers<[1], [0], [0], [1], [0, 0, 1, 1], [], []>} : vector<32x128xbf16>, vector<128x128xbf16>, vector<32x128xf32> -> vector<32x128xf32>
    %c0_19 = arith.constant 0 : index
    %c0_20 = arith.constant 0 : index
    %44 = vector.load %arg5[%c0_19, %c0_20] : memref<1x128xf32, #tpu.memory_space<vmem>>, vector<1x128xf32>
    %45 = vector.broadcast %44 : vector<1x128xf32> to vector<32x128xf32>
    %46 = arith.addf %43, %45 : vector<32x128xf32>
    %47 = arith.addf %5, %46 : vector<32x128xf32>
    %48 = vector.shape_cast %47 : vector<32x128xf32> to vector<2x16x128xf32>
    %cst_21 = arith.constant dense<0.000000e+00> : vector<2x128xf32>
    %49 = vector.multi_reduction <add>, %48, %cst_21 [1] : vector<2x16x128xf32> to vector<2x128xf32>
    %50 = vector.shape_cast %49 : vector<2x128xf32> to vector<2x1x128xf32>
    %cst_22 = arith.constant 1.600000e+01 : f32
    %51 = vector.broadcast %cst_22 : f32 to vector<2x1x128xf32>
    %52 = arith.divf %50, %51 : vector<2x1x128xf32>
    %53 = vector.broadcast %52 : vector<2x1x128xf32> to vector<2x16x128xf32>
    %54 = arith.subf %48, %53 : vector<2x16x128xf32>
    %55 = arith.mulf %54, %54 : vector<2x16x128xf32>
    %cst_23 = arith.constant dense<0.000000e+00> : vector<2x128xf32>
    %56 = vector.multi_reduction <add>, %55, %cst_23 [1] : vector<2x16x128xf32> to vector<2x128xf32>
    %57 = vector.shape_cast %56 : vector<2x128xf32> to vector<2x1x128xf32>
    %cst_24 = arith.constant 1.600000e+01 : f32
    %58 = vector.broadcast %cst_24 : f32 to vector<2x1x128xf32>
    %59 = arith.divf %57, %58 : vector<2x1x128xf32>
    %60 = vector.broadcast %52 : vector<2x1x128xf32> to vector<2x16x128xf32>
    %61 = arith.subf %48, %60 : vector<2x16x128xf32>
    %cst_25 = arith.constant 9.99999974E-6 : f32
    %62 = vector.broadcast %cst_25 : f32 to vector<2x1x128xf32>
    %63 = arith.addf %59, %62 : vector<2x1x128xf32>
    %64 = math.rsqrt %63 : vector<2x1x128xf32>
    %65 = vector.broadcast %64 : vector<2x1x128xf32> to vector<2x16x128xf32>
    %66 = arith.mulf %61, %65 : vector<2x16x128xf32>
    %c0_26 = arith.constant 0 : index
    %c0_27 = arith.constant 0 : index
    %67 = vector.load %arg6[%c0_26, %c0_27] : memref<1x128xf32, #tpu.memory_space<vmem>>, vector<1x128xf32>
    %68 = vector.shape_cast %67 : vector<1x128xf32> to vector<1x1x128xf32>
    %69 = vector.broadcast %68 : vector<1x1x128xf32> to vector<2x16x128xf32>
    %70 = arith.mulf %66, %69 : vector<2x16x128xf32>
    %c0_28 = arith.constant 0 : index
    %c0_29 = arith.constant 0 : index
    %71 = vector.load %arg7[%c0_28, %c0_29] : memref<1x128xf32, #tpu.memory_space<vmem>>, vector<1x128xf32>
    %72 = vector.shape_cast %71 : vector<1x128xf32> to vector<1x1x128xf32>
    %73 = vector.broadcast %72 : vector<1x1x128xf32> to vector<2x16x128xf32>
    %74 = arith.addf %70, %73 : vector<2x16x128xf32>
    %75 = vector.shape_cast %74 : vector<2x16x128xf32> to vector<32x128xf32>
    %c0_i32_30 = arith.constant 0 : i32
    %76 = tpu.memref_slice %arg17[%c0_i32_30] : memref<2x!tpu.dma_semaphore, #tpu.memory_space<semaphore_mem>> -> memref<1x!tpu.dma_semaphore, #tpu.memory_space<semaphore_mem>>
    %77 = tpu.memref_squeeze %76 : memref<1x!tpu.dma_semaphore, #tpu.memory_space<semaphore_mem>> -> memref<!tpu.dma_semaphore, #tpu.memory_space<semaphore_mem>>
    tpu.wait_dma2 semaphore(%77 : memref<!tpu.dma_semaphore, #tpu.memory_space<semaphore_mem>>) src(%arg12 : memref<128x1024xbf16, #tpu.memory_space<any>>) dst(%arg15 : memref<128x1024xbf16, #tpu.memory_space<vmem>>)
    %78 = arith.truncf %75 : vector<32x128xf32> to vector<32x128xbf16>
    %c0_31 = arith.constant 0 : index
    %c0_32 = arith.constant 0 : index
    %79 = vector.load %arg15[%c0_31, %c0_32] : memref<128x1024xbf16, #tpu.memory_space<vmem>>, vector<128x1024xbf16>
    %cst_33 = arith.constant dense<0.000000e+00> : vector<32x1024xf32>
    %80 = tpu.matmul %78, %79, %cst_33 {dimension_numbers = #tpu.dot_dimension_numbers<[1], [0], [0], [1], [0, 0, 1, 1], [], []>} : vector<32x128xbf16>, vector<128x1024xbf16>, vector<32x1024xf32> -> vector<32x1024xf32>
    %81 = vector.extract_strided_slice %80 {offsets = [0, 0], sizes = [32, 512], strides = [1, 1]} : vector<32x1024xf32> to vector<32x512xf32>
    %82 = vector.extract_strided_slice %80 {offsets = [0, 512], sizes = [32, 512], strides = [1, 1]} : vector<32x1024xf32> to vector<32x512xf32>
    %cst_34 = arith.constant 0.000000e+00 : f32
    %83 = vector.broadcast %cst_34 : f32 to vector<32x512xf32>
    %84 = arith.subf %83, %81 : vector<32x512xf32>
    %85 = math.exp %84 : vector<32x512xf32>
    %cst_35 = arith.constant 1.000000e+00 : f32
    %86 = vector.broadcast %cst_35 : f32 to vector<32x512xf32>
    %87 = arith.addf %86, %85 : vector<32x512xf32>
    %88 = arith.divf %81, %87 : vector<32x512xf32>
    %c1_i32_36 = arith.constant 1 : i32
    %89 = tpu.memref_slice %arg17[%c1_i32_36] : memref<2x!tpu.dma_semaphore, #tpu.memory_space<semaphore_mem>> -> memref<1x!tpu.dma_semaphore, #tpu.memory_space<semaphore_mem>>
    %90 = tpu.memref_squeeze %89 : memref<1x!tpu.dma_semaphore, #tpu.memory_space<semaphore_mem>> -> memref<!tpu.dma_semaphore, #tpu.memory_space<semaphore_mem>>
    tpu.wait_dma2 semaphore(%90 : memref<!tpu.dma_semaphore, #tpu.memory_space<semaphore_mem>>) src(%arg13 : memref<512x128xbf16, #tpu.memory_space<any>>) dst(%arg16 : memref<512x128xbf16, #tpu.memory_space<vmem>>)
    %91 = arith.mulf %88, %82 : vector<32x512xf32>
    %92 = arith.truncf %91 : vector<32x512xf32> to vector<32x512xbf16>
    %c0_37 = arith.constant 0 : index
    %c0_38 = arith.constant 0 : index
    %93 = vector.load %arg16[%c0_37, %c0_38] : memref<512x128xbf16, #tpu.memory_space<vmem>>, vector<512x128xbf16>
    %cst_39 = arith.constant dense<0.000000e+00> : vector<32x128xf32>
    %94 = tpu.matmul %92, %93, %cst_39 {dimension_numbers = #tpu.dot_dimension_numbers<[1], [0], [0], [1], [0, 0, 1, 1], [], []>} : vector<32x512xbf16>, vector<512x128xbf16>, vector<32x128xf32> -> vector<32x128xf32>
    %95 = arith.addf %75, %94 : vector<32x128xf32>
    %96 = vector.shape_cast %95 : vector<32x128xf32> to vector<2x16x128xf32>
    %cst_40 = arith.constant dense<0.000000e+00> : vector<2x128xf32>
    %97 = vector.multi_reduction <add>, %96, %cst_40 [1] : vector<2x16x128xf32> to vector<2x128xf32>
    %98 = vector.shape_cast %97 : vector<2x128xf32> to vector<2x1x128xf32>
    %cst_41 = arith.constant 1.600000e+01 : f32
    %99 = vector.broadcast %cst_41 : f32 to vector<2x1x128xf32>
    %100 = arith.divf %98, %99 : vector<2x1x128xf32>
    %101 = vector.broadcast %100 : vector<2x1x128xf32> to vector<2x16x128xf32>
    %102 = arith.subf %96, %101 : vector<2x16x128xf32>
    %103 = arith.mulf %102, %102 : vector<2x16x128xf32>
    %cst_42 = arith.constant dense<0.000000e+00> : vector<2x128xf32>
    %104 = vector.multi_reduction <add>, %103, %cst_42 [1] : vector<2x16x128xf32> to vector<2x128xf32>
    %105 = vector.shape_cast %104 : vector<2x128xf32> to vector<2x1x128xf32>
    %cst_43 = arith.constant 1.600000e+01 : f32
    %106 = vector.broadcast %cst_43 : f32 to vector<2x1x128xf32>
    %107 = arith.divf %105, %106 : vector<2x1x128xf32>
    %108 = vector.broadcast %100 : vector<2x1x128xf32> to vector<2x16x128xf32>
    %109 = arith.subf %96, %108 : vector<2x16x128xf32>
    %cst_44 = arith.constant 9.99999974E-6 : f32
    %110 = vector.broadcast %cst_44 : f32 to vector<2x1x128xf32>
    %111 = arith.addf %107, %110 : vector<2x1x128xf32>
    %112 = math.rsqrt %111 : vector<2x1x128xf32>
    %113 = vector.broadcast %112 : vector<2x1x128xf32> to vector<2x16x128xf32>
    %114 = arith.mulf %109, %113 : vector<2x16x128xf32>
    %c0_45 = arith.constant 0 : index
    %c0_46 = arith.constant 0 : index
    %115 = vector.load %arg10[%c0_45, %c0_46] : memref<1x128xf32, #tpu.memory_space<vmem>>, vector<1x128xf32>
    %116 = vector.shape_cast %115 : vector<1x128xf32> to vector<1x1x128xf32>
    %117 = vector.broadcast %116 : vector<1x1x128xf32> to vector<2x16x128xf32>
    %118 = arith.mulf %114, %117 : vector<2x16x128xf32>
    %c0_47 = arith.constant 0 : index
    %c0_48 = arith.constant 0 : index
    %119 = vector.load %arg11[%c0_47, %c0_48] : memref<1x128xf32, #tpu.memory_space<vmem>>, vector<1x128xf32>
    %120 = vector.shape_cast %119 : vector<1x128xf32> to vector<1x1x128xf32>
    %121 = vector.broadcast %120 : vector<1x1x128xf32> to vector<2x16x128xf32>
    %122 = arith.addf %118, %121 : vector<2x16x128xf32>
    %c0_49 = arith.constant 0 : index
    %c0_50 = arith.constant 0 : index
    %c0_51 = arith.constant 0 : index
    %123 = vector.load %arg14[%c0_49, %c0_50, %c0_51] : memref<2x16x128xf32, #tpu.memory_space<vmem>>, vector<2x16x128xf32>
    tpu.vector_store %arg14[%c0_49, %c0_50, %c0_51], %122 {strides = array<i32>} : memref<2x16x128xf32, #tpu.memory_space<vmem>>, vector<2x16x128xf32>,
    return
  }
  func.func @transform_0(%arg0: i32) -> (i32, i32, i32) {
    %c0_i32 = arith.constant 0 : i32
    %c0_i32_0 = arith.constant 0 : i32
    %c0_i32_1 = arith.constant 0 : i32
    %c0_i32_2 = arith.constant 0 : i32
    return %c0_i32, %c0_i32_0, %c0_i32_1 : i32, i32, i32
  }
  func.func @transform_1(%arg0: i32) -> (i32, i32) {
    %c0_i32 = arith.constant 0 : i32
    %c0_i32_0 = arith.constant 0 : i32
    %c0_i32_1 = arith.constant 0 : i32
    return %c0_i32, %c0_i32_0 : i32, i32
  }
  func.func @transform_2(%arg0: i32) -> (i32, i32) {
    %c0_i32 = arith.constant 0 : i32
    %c0_i32_0 = arith.constant 0 : i32
    %c0_i32_1 = arith.constant 0 : i32
    return %c0_i32, %c0_i32_0 : i32, i32
  }
  func.func @transform_3(%arg0: i32) -> (i32, i32) {
    %c0_i32 = arith.constant 0 : i32
    %c0_i32_0 = arith.constant 0 : i32
    %c0_i32_1 = arith.constant 0 : i32
    return %c0_i32, %c0_i32_0 : i32, i32
  }
  func.func @transform_4(%arg0: i32) -> (i32, i32) {
    %c0_i32 = arith.constant 0 : i32
    %c0_i32_0 = arith.constant 0 : i32
    %c0_i32_1 = arith.constant 0 : i32
    return %c0_i32, %c0_i32_0 : i32, i32
  }
  func.func @transform_5(%arg0: i32) -> (i32, i32) {
    %c0_i32 = arith.constant 0 : i32
    %c0_i32_0 = arith.constant 0 : i32
    %c0_i32_1 = arith.constant 0 : i32
    return %c0_i32, %c0_i32_0 : i32, i32
  }
  func.func @transform_6(%arg0: i32) -> (i32, i32) {
    %c0_i32 = arith.constant 0 : i32
    %c0_i32_0 = arith.constant 0 : i32
    %c0_i32_1 = arith.constant 0 : i32
    return %c0_i32, %c0_i32_0 : i32, i32
  }
  func.func @transform_7(%arg0: i32) -> (i32, i32) {
    %c0_i32 = arith.constant 0 : i32
    %c0_i32_0 = arith.constant 0 : i32
    %c0_i32_1 = arith.constant 0 : i32
    return %c0_i32, %c0_i32_0 : i32, i32
  }
  func.func @transform_8(%arg0: i32) -> (i32, i32) {
    %c0_i32 = arith.constant 0 : i32
    %c0_i32_0 = arith.constant 0 : i32
    %c0_i32_1 = arith.constant 0 : i32
    return %c0_i32, %c0_i32_0 : i32, i32
  }
  func.func @transform_9(%arg0: i32) -> (i32, i32) {
    %c0_i32 = arith.constant 0 : i32
    %c0_i32_0 = arith.constant 0 : i32
    %c0_i32_1 = arith.constant 0 : i32
    return %c0_i32, %c0_i32_0 : i32, i32
  }
  func.func @transform_10(%arg0: i32) -> (i32, i32) {
    %c0_i32 = arith.constant 0 : i32
    %c0_i32_0 = arith.constant 0 : i32
    %c0_i32_1 = arith.constant 0 : i32
    return %c0_i32, %c0_i32_0 : i32, i32
  }
  func.func @transform_13(%arg0: i32) -> (i32, i32, i32) {
    %c0_i32 = arith.constant 0 : i32
    %c0_i32_0 = arith.constant 0 : i32
    %c0_i32_1 = arith.constant 0 : i32
    %c0_i32_2 = arith.constant 0 : i32
    return %c0_i32, %c0_i32_0, %c0_i32_1 : i32, i32, i32
  }
}

</mosaic_0001>

<llo_original>
// kernel: tpu_custom_call.1
$region0: #{tpu_custom_call.1}
  #allocation0 [shape = 'u32[]', space=smem, size = 0x4, offset = 0x4, fixed_abs, tag = 'smem constant byte address 0x4 - core index']
  #allocation1 [shape = 'u32[144,128]{1,0:T(1,128)}', space=vmem, size = 0x12000, scoped, tag = 'internal scratch']
  #allocation2 [shape = 'bf16[128,1024]{1,0:T(16,128)(2,1)}', space=vmem, size = 0x40000, scoped, tag = 'scratch operand']
  #allocation3 [shape = 'bf16[512,128]{1,0:T(16,128)(2,1)}', space=vmem, size = 0x20000, scoped, tag = 'scratch operand']
  #allocation4 [shape = 's32[2]{0}', space=sflag, size = 0x8, scoped, tag = 'scratch operand']
  #allocation15 [shape = 's32[]', space=sflag, size = 0x4, offset = 0, fixed_abs, tag = 'sflag constant byte address 0x0 - dummy sync flag']
  #allocation17 [shape = 's32[]', space=sflag, size = 0x4, offset = 0, fixed_abs, tag = 'sflag constant byte address 0x0 - dummy sync flag']
  #allocation18 [shape = 's32[]', space=sflag, size = 0x4, offset = 0, fixed_abs, tag = 'sflag constant byte address 0x0 - dummy sync flag']
  #allocation19 [shape = 'u32[]', space=smem, size = 0x4, offset = 0x44, fixed_abs, tag = 'smem constant byte address 0x44 - assertion arg 0']
  #allocation20 [shape = 'u32[]', space=smem, size = 0x4, offset = 0x48, fixed_abs, tag = 'smem constant byte address 0x48 - assertion arg 1']
  %s0 = inlined_call_operand.hbm [shape: f32[2,16,128], index: 0, kind: input, shape index: {}]
  %s1 = inlined_call_operand.hbm [shape: bf16[128,384], index: 1, kind: input, shape index: {}]
  %s2 = inlined_call_operand.vmem [shape: f32[1,384], index: 2, kind: input, shape index: {}]
  %s3 = inlined_call_operand.hbm [shape: bf16[128,128], index: 3, kind: input, shape index: {}]
  %s4 = inlined_call_operand.vmem [shape: f32[1,128], index: 4, kind: input, shape index: {}]
  %s5 = inlined_call_operand.vmem [shape: f32[1,128], index: 5, kind: input, shape index: {}]
  %s6 = inlined_call_operand.vmem [shape: f32[1,128], index: 6, kind: input, shape index: {}]
  %s7 = inlined_call_operand.hbm [shape: f32[256,128], index: 7, kind: input, shape index: {}]
  %s8 = inlined_call_operand.hbm [shape: f32[32,256], index: 8, kind: input, shape index: {}]
  %s9 = inlined_call_operand.vmem [shape: f32[1,128], index: 9, kind: input, shape index: {}]
  %s10 = inlined_call_operand.vmem [shape: f32[1,128], index: 10, kind: input, shape index: {}]
  %s11 = inlined_call_operand.hbm [shape: bf16[128,1024], index: 11, kind: input, shape index: {}]
  %s12 = inlined_call_operand.hbm [shape: bf16[512,128], index: 12, kind: input, shape index: {}]
  %s13 = inlined_call_operand.hbm [shape: f32[2,16,128], index: 13, kind: output, shape index: {}]
  %s14 = sld [smem:[#allocation0]]
  $region78: #{tpu_custom_call.1} parent=0
    _
  %s16 = ssub.s32 1, %s14
  %s17 = scalar_select 0, %s16, %s14
  $region1: #{tpu_custom_call.1} parent=0
    #allocation5 [shape = 'u8[16384]{0}', space=vmem, size = 0x4000, scoped, tag = 'input window, operand 0, single buffered']
    #allocation6 [shape = 's32[1]{0}', space=sflag, size = 0x4, scoped, tag = 'scoped memory for tpu_custom_call.1']
    #allocation7 [shape = 's32[1]{0}', space=sflag, size = 0x4, scoped, tag = 'scoped memory for tpu_custom_call.1']
    #allocation8 [shape = 'u8[98304]{0}', space=vmem, size = 0x18000, scoped, tag = 'input window, operand 1, single buffered']
    #allocation9 [shape = 's32[1]{0}', space=sflag, size = 0x4, scoped, tag = 'scoped memory for tpu_custom_call.1']
    #allocation10 [shape = 'u8[32768]{0}', space=vmem, size = 0x8000, scoped, tag = 'input window, operand 3, single buffered']
    #allocation11 [shape = 'u8[131072]{0}', space=vmem, size = 0x20000, scoped, tag = 'input window, operand 7, single buffered']
    #allocation12 [shape = 's32[1]{0}', space=sflag, size = 0x4, scoped, tag = 'scoped memory for tpu_custom_call.1']
    #allocation13 [shape = 'u8[32768]{0}', space=vmem, size = 0x8000, scoped, tag = 'input window, operand 8, single buffered']
    #allocation14 [shape = 'u8[16384]{0}', space=vmem, size = 0x4000, scoped, tag = 'output window, operand 0, single buffered']
    #allocation16 [shape = 'u32[9]{0}', space=smem, size = 0x24, scoped, tag = 'DMA stride descriptor']
    %18 = vsyncpa [#allocation6], 0
    %19 = vsyncpa [#allocation9], 0
    %20 = vsyncpa [#allocation12], 0
    %21 = vsyncpa [#allocation7], 0
    // Predicated region
    $region2: #{tpu_custom_call.1} parent=1 // pred_check
      _
    $region3: #{tpu_custom_call.1} parent=1 // pred_check_branch
      %23 = sbr.rel (0) target = $region5
    $region4: #{tpu_custom_call.1} parent=1 // pred_region
      %s25 = ssub.s32 512, 512
      %26 = vsyncadd [#allocation6], %s25
      %s27 = sshll.u32 [#allocation5], 4
      %s28 = int_to_ptr.vmem [resolvable:$true] %s27
      %33 = dma.hbm_to_vmem [thread:$0]  %s0, 512, %s28, [#allocation6], 128, 128, 8
    $region5: #{tpu_custom_call.1} parent=1 // pred_fallthru
      _
    // Predicated region
    $region6: #{tpu_custom_call.1} parent=1 // pred_check
      _
    $region7: #{tpu_custom_call.1} parent=1 // pred_check_branch
      %35 = sbr.rel (0) target = $region9
    $region8: #{tpu_custom_call.1} parent=1 // pred_region
      %s37 = ssub.s32 3072, 3072
      %38 = vsyncadd [#allocation9], %s37
      %s39 = sshll.u32 [#allocation8], 4
      %s40 = int_to_ptr.vmem [resolvable:$true] %s39
      %45 = dma.hbm_to_vmem [thread:$0]  %s1, 3072, %s40, [#allocation9], 192, 192, 12
    $region9: #{tpu_custom_call.1} parent=1 // pred_fallthru
      _
    // Predicated region
    $region10: #{tpu_custom_call.1} parent=1 // pred_check
      _
    $region11: #{tpu_custom_call.1} parent=1 // pred_check_branch
      %47 = sbr.rel (0) target = $region13
    $region12: #{tpu_custom_call.1} parent=1 // pred_region
      _
    $region13: #{tpu_custom_call.1} parent=1 // pred_fallthru
      _
    // Predicated region
    $region14: #{tpu_custom_call.1} parent=1 // pred_check
      _
    $region15: #{tpu_custom_call.1} parent=1 // pred_check_branch
      %49 = sbr.rel (0) target = $region17
    $region16: #{tpu_custom_call.1} parent=1 // pred_region
      %s51 = ssub.s32 1024, 1024
      %52 = vsyncadd [#allocation9], %s51
      %s53 = sshll.u32 [#allocation10], 4
      %s54 = int_to_ptr.vmem [resolvable:$true] %s53
      %59 = dma.hbm_to_vmem [thread:$0]  %s3, 1024, %s54, [#allocation9], 64, 64, 4
    $region17: #{tpu_custom_call.1} parent=1 // pred_fallthru
      _
    // Predicated region
    $region18: #{tpu_custom_call.1} parent=1 // pred_check
      _
    $region19: #{tpu_custom_call.1} parent=1 // pred_check_branch
      %61 = sbr.rel (0) target = $region21
    $region20: #{tpu_custom_call.1} parent=1 // pred_region
      _
    $region21: #{tpu_custom_call.1} parent=1 // pred_fallthru
      _
    // Predicated region
    $region22: #{tpu_custom_call.1} parent=1 // pred_check
      _
    $region23: #{tpu_custom_call.1} parent=1 // pred_check_branch
      %63 = sbr.rel (0) target = $region25
    $region24: #{tpu_custom_call.1} parent=1 // pred_region
      _
    $region25: #{tpu_custom_call.1} parent=1 // pred_fallthru
      _
    // Predicated region
    $region26: #{tpu_custom_call.1} parent=1 // pred_check
      _
    $region27: #{tpu_custom_call.1} parent=1 // pred_check_branch
      %65 = sbr.rel (0) target = $region29
    $region28: #{tpu_custom_call.1} parent=1 // pred_region
      _
    $region29: #{tpu_custom_call.1} parent=1 // pred_fallthru
      _
    // Predicated region
    $region30: #{tpu_custom_call.1} parent=1 // pred_check
      _
    $region31: #{tpu_custom_call.1} parent=1 // pred_check_branch
      %67 = sbr.rel (0) target = $region33
    $region32: #{tpu_custom_call.1} parent=1 // pred_region
      %s69 = ssub.s32 4096, 4096
      %70 = vsyncadd [#allocation12], %s69
      %s71 = sshll.u32 [#allocation11], 4
      %s72 = int_to_ptr.vmem [resolvable:$true] %s71
      %77 = dma.hbm_to_vmem [thread:$0]  %s7, 4096, %s72, [#allocation12], 128, 128, 8
    $region33: #{tpu_custom_call.1} parent=1 // pred_fallthru
      _
    // Predicated region
    $region34: #{tpu_custom_call.1} parent=1 // pred_check
      _
    $region35: #{tpu_custom_call.1} parent=1 // pred_check_branch
      %79 = sbr.rel (0) target = $region37
    $region36: #{tpu_custom_call.1} parent=1 // pred_region
      %s81 = ssub.s32 1024, 1024
      %82 = vsyncadd [#allocation12], %s81
      %s83 = sshll.u32 [#allocation13], 4
      %s84 = int_to_ptr.vmem [resolvable:$true] %s83
      %89 = dma.hbm_to_vmem [thread:$0]  %s8, 1024, %s84, [#allocation12], 256, 256, 16
    $region37: #{tpu_custom_call.1} parent=1 // pred_fallthru
      _
    // Predicated region
    $region38: #{tpu_custom_call.1} parent=1 // pred_check
      _
    $region39: #{tpu_custom_call.1} parent=1 // pred_check_branch
      %91 = sbr.rel (0) target = $region41
    $region40: #{tpu_custom_call.1} parent=1 // pred_region
      _
    $region41: #{tpu_custom_call.1} parent=1 // pred_fallthru
      _
    // Predicated region
    $region42: #{tpu_custom_call.1} parent=1 // pred_check
      _
    $region43: #{tpu_custom_call.1} parent=1 // pred_check_branch
      %93 = sbr.rel (0) target = $region45
    $region44: #{tpu_custom_call.1} parent=1 // pred_region
      _
    $region45: #{tpu_custom_call.1} parent=1 // pred_fallthru
      _
    // Predicated region
    $region46: #{tpu_custom_call.1} parent=1 // pred_check
      _
    $region47: #{tpu_custom_call.1} parent=1 // pred_check_branch
      %95 = sbr.rel (0) target = $region49
    $region48: #{tpu_custom_call.1} parent=1 // pred_region
      %96 = dma.done [#allocation6], 512
    $region49: #{tpu_custom_call.1} parent=1 // pred_fallthru
      _
    // Predicated region
    $region50: #{tpu_custom_call.1} parent=1 // pred_check
      _
    $region51: #{tpu_custom_call.1} parent=1 // pred_check_branch
      %98 = sbr.rel (0) target = $region53
    $region52: #{tpu_custom_call.1} parent=1 // pred_region
      %99 = dma.done [#allocation9], 3072
    $region53: #{tpu_custom_call.1} parent=1 // pred_fallthru
      _
    // Predicated region
    $region54: #{tpu_custom_call.1} parent=1 // pred_check
      _
    $region55: #{tpu_custom_call.1} parent=1 // pred_check_branch
      %101 = sbr.rel (0) target = $region57
    $region56: #{tpu_custom_call.1} parent=1 // pred_region
      %102 = dma.done [#allocation9], 1024
    $region57: #{tpu_custom_call.1} parent=1 // pred_fallthru
      _
    // Predicated region
    $region58: #{tpu_custom_call.1} parent=1 // pred_check
      _
    $region59: #{tpu_custom_call.1} parent=1 // pred_check_branch
      %104 = sbr.rel (0) target = $region61
    $region60: #{tpu_custom_call.1} parent=1 // pred_region
      %105 = dma.done [#allocation12], 4096
    $region61: #{tpu_custom_call.1} parent=1 // pred_fallthru
      _
    // Predicated region
    $region62: #{tpu_custom_call.1} parent=1 // pred_check
      _
    $region63: #{tpu_custom_call.1} parent=1 // pred_check_branch
      %107 = sbr.rel (0) target = $region65
    $region64: #{tpu_custom_call.1} parent=1 // pred_region
      %108 = dma.done [#allocation12], 1024
    $region65: #{tpu_custom_call.1} parent=1 // pred_fallthru
      _
    %s111 = sshll.u32 1, 14
    %s112 = sxor.u32 4294967295, %s111
    %s114 = sld [smem:[#allocation0]]
    %s115 = sadd.s32 2, %s114
    %s117 = sshll.u32 7, 26
    %s118 = sxor.u32 4294967295, %s117
    %s119 = sand.u32 0, %s118
    %s120 = sshll.u32 %s115, 26
    %s121 = sor.u32 %s119, %s120
    %s122 = sshll.u32 [#allocation2], 4
    %s123 = int_to_ptr.vmem [resolvable:$true] %s122
    %126 = sst [smem:[#allocation16]] 1024
    %s127 = scalar_lea.smem [#allocation16], 1
    %128 = sst [smem:[%s127]] 1024
    %s129 = scalar_lea.smem [#allocation16], 2
    %130 = sst [smem:[%s129]] 8
    %s131 = scalar_lea.smem [#allocation16], 3
    %132 = sst [smem:[%s131]] 64
    %s133 = scalar_lea.smem [#allocation16], 4
    %134 = sst [smem:[%s133]] 128
    %s135 = scalar_lea.smem [#allocation16], 5
    %136 = sst [smem:[%s135]] 2
    %s137 = scalar_lea.smem [#allocation16], 6
    %138 = sst [smem:[%s137]] 512
    %s139 = scalar_lea.smem [#allocation16], 7
    %140 = sst [smem:[%s139]] 64
    %s141 = scalar_lea.smem [#allocation16], 8
    %142 = sst [smem:[%s141]] 4
    %144 = dma.general %s11, 8192, %s123, [#allocation4], [#allocation15], [#allocation16], %s121, 0
    %s145 = scalar_lea.sflag [#allocation4], 1
    // Predicated region
    $region66: #{tpu_custom_call.1} parent=1 // pred_check
      _
    $region67: #{tpu_custom_call.1} parent=1 // pred_check_branch
      %147 = sbr.rel target = $region69
    $region68: #{tpu_custom_call.1} parent=1 // pred_region
      %148 = sst [smem:[#allocation19]] [#allocation18]
      %149 = sst [smem:[#allocation20]] [#allocation17]
    $region69: #{tpu_custom_call.1} parent=1 // pred_fallthru
      _
    %151 = shalt.err (0)
    %s153 = sshll.u32 [#allocation3], 4
    %s154 = int_to_ptr.vmem [resolvable:$true] %s153
    %156 = dma.hbm_to_vmem [thread:$0]  %s12, 4096, %s154, %s145
    %v157 = vld [vmem:[#allocation5] sm:$0xff]
    %v158 = vld [vmem:[#allocation5 + $0x8] sm:$0xff]
    %v159 = vld [vmem:[#allocation5 + $0x10] sm:$0xff]
    %v160 = vld [vmem:[#allocation5 + $0x18] sm:$0xff]
    %v161 = vpack.c.bf16 %v158, %v157
    %v162 = vpack.c.bf16 %v160, %v159
    %v163 = vld [vmem:[#allocation8] sm:$0xff]
    %v164 = vld [vmem:[#allocation8 + $0x8] sm:$0xf]
    %v165 = vld [vmem:[#allocation8 + $0xc] sm:$0xff]
    %v166 = vld [vmem:[#allocation8 + $0x14] sm:$0xf]
    %v167 = vld [vmem:[#allocation8 + $0x18] sm:$0xff]
    %v168 = vld [vmem:[#allocation8 + $0x20] sm:$0xf]
    %v169 = vld [vmem:[#allocation8 + $0x24] sm:$0xff]
    %v170 = vld [vmem:[#allocation8 + $0x2c] sm:$0xf]
    %v171 = vld [vmem:[#allocation8 + $0x30] sm:$0xff]
    %v172 = vld [vmem:[#allocation8 + $0x38] sm:$0xf]
    %v173 = vld [vmem:[#allocation8 + $0x3c] sm:$0xff]
    %v174 = vld [vmem:[#allocation8 + $0x44] sm:$0xf]
    %v175 = vld [vmem:[#allocation8 + $0x48] sm:$0xff]
    %v176 = vld [vmem:[#allocation8 + $0x50] sm:$0xf]
    %v177 = vld [vmem:[#allocation8 + $0x54] sm:$0xff]
    %v178 = vld [vmem:[#allocation8 + $0x5c] sm:$0xf]
    %v179 = vld [vmem:[#allocation8 + $0x60] sm:$0xff]
    %v180 = vld [vmem:[#allocation8 + $0x68] sm:$0xf]
    %v181 = vld [vmem:[#allocation8 + $0x6c] sm:$0xff]
    %v182 = vld [vmem:[#allocation8 + $0x74] sm:$0xf]
    %v183 = vld [vmem:[#allocation8 + $0x78] sm:$0xff]
    %v184 = vld [vmem:[#allocation8 + $0x80] sm:$0xf]
    %v185 = vld [vmem:[#allocation8 + $0x84] sm:$0xff]
    %v186 = vld [vmem:[#allocation8 + $0x8c] sm:$0xf]
    %v187 = vld [vmem:[#allocation8 + $0x90] sm:$0xff]
    %v188 = vld [vmem:[#allocation8 + $0x98] sm:$0xf]
    %v189 = vld [vmem:[#allocation8 + $0x9c] sm:$0xff]
    %v190 = vld [vmem:[#allocation8 + $0xa4] sm:$0xf]
    %v191 = vld [vmem:[#allocation8 + $0xa8] sm:$0xff]
    %v192 = vld [vmem:[#allocation8 + $0xb0] sm:$0xf]
    %v193 = vld [vmem:[#allocation8 + $0xb4] sm:$0xff]
    %v194 = vld [vmem:[#allocation8 + $0xbc] sm:$0xf]
    %v195 = vld [vmem:[%s2] sm:$0x7]
    %v197 = vlaneseq
    %v198 = vshrl.u32 %v197, 7
    %v199 = vsub.s32 0, %v198
    %v200 = vrot.slane %v195, %v199
    %v201 = vlaneseq
    %v202 = vshrl.u32 %v201, 7
    %v203 = vsub.s32 1, %v202
    %v204 = vrot.slane %v195, %v203
    %v205 = vlaneseq
    %v206 = vshrl.u32 %v205, 7
    %v207 = vsub.s32 2, %v206
    %v208 = vrot.slane %v195, %v207
    %v244 = vunpack.c.l.b16 %v163
    %v245 = vunpack.c.h.b16 %v163
    %v246 = vunpack.c.l.b16 %v164
    %v247 = vunpack.c.l.b16 %v165
    %v248 = vunpack.c.h.b16 %v165
    %v249 = vunpack.c.l.b16 %v166
    %v250 = vunpack.c.l.b16 %v167
    %v251 = vunpack.c.h.b16 %v167
    %v252 = vunpack.c.l.b16 %v168
    %v253 = vunpack.c.l.b16 %v169
    %v254 = vunpack.c.h.b16 %v169
    %v255 = vunpack.c.l.b16 %v170
    %v256 = vunpack.c.l.b16 %v171
    %v257 = vunpack.c.h.b16 %v171
    %v258 = vunpack.c.l.b16 %v172
    %v259 = vunpack.c.l.b16 %v173
    %v260 = vunpack.c.h.b16 %v173
    %v261 = vunpack.c.l.b16 %v174
    %v262 = vunpack.c.l.b16 %v175
    %v263 = vunpack.c.h.b16 %v175
    %v264 = vunpack.c.l.b16 %v176
    %v265 = vunpack.c.l.b16 %v177
    %v266 = vunpack.c.h.b16 %v177
    %v267 = vunpack.c.l.b16 %v178
    %v268 = vunpack.c.l.b16 %v179
    %v269 = vunpack.c.h.b16 %v179
    %v270 = vunpack.c.l.b16 %v180
    %v271 = vunpack.c.l.b16 %v181
    %v272 = vunpack.c.h.b16 %v181
    %v273 = vunpack.c.l.b16 %v182
    %v274 = vunpack.c.l.b16 %v183
    %v275 = vunpack.c.h.b16 %v183
    %v276 = vunpack.c.l.b16 %v184
    %v277 = vunpack.c.l.b16 %v185
    %v278 = vunpack.c.h.b16 %v185
    %v279 = vunpack.c.l.b16 %v186
    %v280 = vunpack.c.l.b16 %v187
    %v281 = vunpack.c.h.b16 %v187
    %v282 = vunpack.c.l.b16 %v188
    %v283 = vunpack.c.l.b16 %v189
    %v284 = vunpack.c.h.b16 %v189
    %v285 = vunpack.c.l.b16 %v190
    %v286 = vunpack.c.l.b16 %v191
    %v287 = vunpack.c.h.b16 %v191
    %v288 = vunpack.c.l.b16 %v192
    %v289 = vunpack.c.l.b16 %v193
    %v290 = vunpack.c.h.b16 %v193
    %v291 = vunpack.c.l.b16 %v194
    %v292 = vpack.c.b16 %v247, %v244
    %v293 = vpack.c.b16 %v248, %v245
    %v294 = vpack.c.b16 %v249, %v246
    %v295 = vpack.c.b16 %v253, %v250
    %v296 = vpack.c.b16 %v254, %v251
    %v297 = vpack.c.b16 %v255, %v252
    %v298 = vpack.c.b16 %v259, %v256
    %v299 = vpack.c.b16 %v260, %v257
    %v300 = vpack.c.b16 %v261, %v258
    %v301 = vpack.c.b16 %v265, %v262
    %v302 = vpack.c.b16 %v266, %v263
    %v303 = vpack.c.b16 %v267, %v264
    %v304 = vpack.c.b16 %v271, %v268
    %v305 = vpack.c.b16 %v272, %v269
    %v306 = vpack.c.b16 %v273, %v270
    %v307 = vpack.c.b16 %v277, %v274
    %v308 = vpack.c.b16 %v278, %v275
    %v309 = vpack.c.b16 %v279, %v276
    %v310 = vpack.c.b16 %v283, %v280
    %v311 = vpack.c.b16 %v284, %v281
    %v312 = vpack.c.b16 %v285, %v282
    %v313 = vpack.c.b16 %v289, %v286
    %v314 = vpack.c.b16 %v290, %v287
    %v315 = vpack.c.b16 %v291, %v288
    %340 = vmatprep.subr.bf16.mxu0 %v293
    %341 = vmatpush1.bf16.msra.mxu0 %v292
    %342 = vmatprep.subr.bf16.mxu0 %v296
    %343 = vmatpush1.bf16.msra.mxu0 %v295
    %344 = vmatprep.subr.bf16.mxu0 %v299
    %345 = vmatpush1.bf16.msra.mxu0 %v298
    %346 = vmatprep.subr.bf16.mxu0 %v302
    %347 = vmatpush1.bf16.msra.mxu0 %v301
    %348 = vmatprep.subr.bf16.mxu0 %v305
    %349 = vmatpush1.bf16.msra.mxu0 %v304
    %350 = vmatprep.subr.bf16.mxu0 %v308
    %351 = vmatpush1.bf16.msra.mxu0 %v307
    %352 = vmatprep.subr.bf16.mxu0 %v311
    %353 = vmatpush1.bf16.msra.mxu0 %v310
    %354 = vmatprep.subr.bf16.mxu0 %v314
    %355 = vmatpush1.bf16.msra.mxu0 %v313
    %356 = vmatprep.subr.bf16.mxu0 0
    %357 = vmatpush1.bf16.msra.mxu0 0
    %358 = vmatprep.subr.bf16.mxu0 0
    %359 = vmatpush1.bf16.msra.mxu0 0
    %360 = vmatprep.subr.bf16.mxu0 0
    %361 = vmatpush1.bf16.msra.mxu0 0
    %362 = vmatprep.subr.bf16.mxu0 0
    %363 = vmatpush1.bf16.msra.mxu0 0
    %364 = vmatprep.subr.bf16.mxu0 0
    %365 = vmatpush1.bf16.msra.mxu0 0
    %366 = vmatprep.subr.bf16.mxu0 0
    %367 = vmatpush1.bf16.msra.mxu0 0
    %368 = vmatprep.subr.bf16.mxu0 0
    %369 = vmatpush1.bf16.msra.mxu0 0
    %370 = vmatprep.subr.bf16.mxu0 0
    %371 = vmatpush1.bf16.msra.mxu0 0
    %372 = vmatprep.mubr.bf16.mxu0 0
    %373 = vmatmul.mubr.bf16.gmra.mrb[0].mxu0 %v161
    %v374 = vpop.f32.mrb[0].mxu0
    %v375 = vadd.f32 %v200, %v374
    %v376 = vpop.f32.mrb[0].mxu0
    %v377 = vadd.f32 %v204, %v376
    %v378 = vpop.f32.mrb[0].mxu0
    %v379 = vadd.f32 %v200, %v378
    %v380 = vpop.f32.mrb[0].mxu0
    %v381 = vadd.f32 %v204, %v380
    %382 = vmatprep.mubr.bf16.mxu0 0
    %383 = vmatmul.mubr.bf16.gmra.mrb[0].mxu0 %v162
    %v384 = vpop.f32.mrb[0].mxu0
    %v385 = vadd.f32 %v200, %v384
    %v386 = vpop.f32.mrb[0].mxu0
    %v387 = vadd.f32 %v204, %v386
    %v388 = vpop.f32.mrb[0].mxu0
    %v389 = vadd.f32 %v200, %v388
    %v390 = vpop.f32.mrb[0].mxu0
    %v391 = vadd.f32 %v204, %v390
    %392 = vdwg.mxu0
    %393 = vmatprep.subr.bf16.mxu0 0
    %394 = vmatpush1.bf16.msra.mxu0 %v294
    %395 = vmatprep.subr.bf16.mxu0 0
    %396 = vmatpush1.bf16.msra.mxu0 %v297
    %397 = vmatprep.subr.bf16.mxu0 0
    %398 = vmatpush1.bf16.msra.mxu0 %v300
    %399 = vmatprep.subr.bf16.mxu0 0
    %400 = vmatpush1.bf16.msra.mxu0 %v303
    %401 = vmatprep.subr.bf16.mxu0 0
    %402 = vmatpush1.bf16.msra.mxu0 %v306
    %403 = vmatprep.subr.bf16.mxu0 0
    %404 = vmatpush1.bf16.msra.mxu0 %v309
    %405 = vmatprep.subr.bf16.mxu0 0
    %406 = vmatpush1.bf16.msra.mxu0 %v312
    %407 = vmatprep.subr.bf16.mxu0 0
    %408 = vmatpush1.bf16.msra.mxu0 %v315
    %409 = vmatprep.subr.bf16.mxu0 0
    %410 = vmatpush1.bf16.msra.mxu0 0
    %411 = vmatprep.subr.bf16.mxu0 0
    %412 = vmatpush1.bf16.msra.mxu0 0
    %413 = vmatprep.subr.bf16.mxu0 0
    %414 = vmatpush1.bf16.msra.mxu0 0
    %415 = vmatprep.subr.bf16.mxu0 0
    %416 = vmatpush1.bf16.msra.mxu0 0
    %417 = vmatprep.subr.bf16.mxu0 0
    %418 = vmatpush1.bf16.msra.mxu0 0
    %419 = vmatprep.subr.bf16.mxu0 0
    %420 = vmatpush1.bf16.msra.mxu0 0
    %421 = vmatprep.subr.bf16.mxu0 0
    %422 = vmatpush1.bf16.msra.mxu0 0
    %423 = vmatprep.subr.bf16.mxu0 0
    %424 = vmatpush1.bf16.msra.mxu0 0
    %425 = vmatprep.mubr.bf16.mxu0 0
    %426 = vmatmul.mubr.bf16.gmra.mrb[0].mxu0 %v161
    %v427 = vpop.f32.mrb[0].mxu0
    %v428 = vadd.f32 %v208, %v427
    %v429 = vpop.f32.mrb[0].mxu0
    %v430 = vpop.f32.mrb[0].mxu0
    %v431 = vadd.f32 %v208, %v430
    %v432 = vpop.f32.mrb[0].mxu0
    %433 = vmatprep.mubr.bf16.mxu0 0
    %434 = vmatmul.mubr.bf16.gmra.mrb[0].mxu0 %v162
    %v435 = vpop.f32.mrb[0].mxu0
    %v436 = vadd.f32 %v208, %v435
    %v437 = vpop.f32.mrb[0].mxu0
    %v438 = vpop.f32.mrb[0].mxu0
    %v439 = vadd.f32 %v208, %v438
    %v440 = vpop.f32.mrb[0].mxu0
    %441 = vdwg.mxu0
    %v442 = vmul.f32 %v375, 0.25
    %v443 = vmul.f32 %v379, 0.25
    %v444 = vmul.f32 %v385, 0.25
    %v445 = vmul.f32 %v389, 0.25
    %v446 = vld [vmem:[#allocation11] sm:$0xff]
    %v447 = vld [vmem:[#allocation11 + $0x8] sm:$0xff]
    %v448 = vld [vmem:[#allocation11 + $0x10] sm:$0xff]
    %v449 = vld [vmem:[#allocation11 + $0x18] sm:$0xff]
    %v450 = vld [vmem:[#allocation11 + $0x20] sm:$0xff]
    %v451 = vld [vmem:[#allocation11 + $0x28] sm:$0xff]
    %v452 = vld [vmem:[#allocation11 + $0x30] sm:$0xff]
    %v453 = vld [vmem:[#allocation11 + $0x38] sm:$0xff]
    %v454 = vld [vmem:[#allocation11 + $0x40] sm:$0xff]
    %v455 = vld [vmem:[#allocation11 + $0x48] sm:$0xff]
    %v456 = vld [vmem:[#allocation11 + $0x50] sm:$0xff]
    %v457 = vld [vmem:[#allocation11 + $0x58] sm:$0xff]
    %v458 = vld [vmem:[#allocation11 + $0x60] sm:$0xff]
    %v459 = vld [vmem:[#allocation11 + $0x68] sm:$0xff]
    %v460 = vld [vmem:[#allocation11 + $0x70] sm:$0xff]
    %v461 = vld [vmem:[#allocation11 + $0x78] sm:$0xff]
    %v462 = vld [vmem:[#allocation11 + $0x80] sm:$0xff]
    %v463 = vld [vmem:[#allocation11 + $0x88] sm:$0xff]
    %v464 = vld [vmem:[#allocation11 + $0x90] sm:$0xff]
    %v465 = vld [vmem:[#allocation11 + $0x98] sm:$0xff]
    %v466 = vld [vmem:[#allocation11 + $0xa0] sm:$0xff]
    %v467 = vld [vmem:[#allocation11 + $0xa8] sm:$0xff]
    %v468 = vld [vmem:[#allocation11 + $0xb0] sm:$0xff]
    %v469 = vld [vmem:[#allocation11 + $0xb8] sm:$0xff]
    %v470 = vld [vmem:[#allocation11 + $0xc0] sm:$0xff]
    %v471 = vld [vmem:[#allocation11 + $0xc8] sm:$0xff]
    %v472 = vld [vmem:[#allocation11 + $0xd0] sm:$0xff]
    %v473 = vld [vmem:[#allocation11 + $0xd8] sm:$0xff]
    %v474 = vld [vmem:[#allocation11 + $0xe0] sm:$0xff]
    %v475 = vld [vmem:[#allocation11 + $0xe8] sm:$0xff]
    %v476 = vld [vmem:[#allocation11 + $0xf0] sm:$0xff]
    %v477 = vld [vmem:[#allocation11 + $0xf8] sm:$0xff]
    %v478 = vmul.f32 %v377, %v446
    %v479 = vmul.f32 %v381, %v447
    %v480 = vmul.f32 %v377, %v448
    %v481 = vmul.f32 %v381, %v449
    %v482 = vmul.f32 %v377, %v450
    %v483 = vmul.f32 %v381, %v451
    %v484 = vmul.f32 %v377, %v452
    %v485 = vmul.f32 %v381, %v453
    %v486 = vmul.f32 %v377, %v454
    %v487 = vmul.f32 %v381, %v455
    %v488 = vmul.f32 %v377, %v456
    %v489 = vmul.f32 %v381, %v457
    %v490 = vmul.f32 %v377, %v458
    %v491 = vmul.f32 %v381, %v459
    %v492 = vmul.f32 %v377, %v460
    %v493 = vmul.f32 %v381, %v461
    %v494 = vmul.f32 %v387, %v462
    %v495 = vmul.f32 %v391, %v463
    %v496 = vmul.f32 %v387, %v464
    %v497 = vmul.f32 %v391, %v465
    %v498 = vmul.f32 %v387, %v466
    %v499 = vmul.f32 %v391, %v467
    %v500 = vmul.f32 %v387, %v468
    %v501 = vmul.f32 %v391, %v469
    %v502 = vmul.f32 %v387, %v470
    %v503 = vmul.f32 %v391, %v471
    %v504 = vmul.f32 %v387, %v472
    %v505 = vmul.f32 %v391, %v473
    %v506 = vmul.f32 %v387, %v474
    %v507 = vmul.f32 %v391, %v475
    %v508 = vmul.f32 %v387, %v476
    %v509 = vmul.f32 %v391, %v477
    %v510 = vmul.f32 %v428, %v446
    %v511 = vmul.f32 %v431, %v447
    %v512 = vmul.f32 %v428, %v448
    %v513 = vmul.f32 %v431, %v449
    %v514 = vmul.f32 %v428, %v450
    %v515 = vmul.f32 %v431, %v451
    %v516 = vmul.f32 %v428, %v452
    %v517 = vmul.f32 %v431, %v453
    %v518 = vmul.f32 %v428, %v454
    %v519 = vmul.f32 %v431, %v455
    %v520 = vmul.f32 %v428, %v456
    %v521 = vmul.f32 %v431, %v457
    %v522 = vmul.f32 %v428, %v458
    %v523 = vmul.f32 %v431, %v459
    %v524 = vmul.f32 %v428, %v460
    %v525 = vmul.f32 %v431, %v461
    %v526 = vmul.f32 %v436, %v462
    %v527 = vmul.f32 %v439, %v463
    %v528 = vmul.f32 %v436, %v464
    %v529 = vmul.f32 %v439, %v465
    %v530 = vmul.f32 %v436, %v466
    %v531 = vmul.f32 %v439, %v467
    %v532 = vmul.f32 %v436, %v468
    %v533 = vmul.f32 %v439, %v469
    %v534 = vmul.f32 %v436, %v470
    %v535 = vmul.f32 %v439, %v471
    %v536 = vmul.f32 %v436, %v472
    %v537 = vmul.f32 %v439, %v473
    %v538 = vmul.f32 %v436, %v474
    %v539 = vmul.f32 %v439, %v475
    %v540 = vmul.f32 %v436, %v476
    %v541 = vmul.f32 %v439, %v477
    %v542 = vld [vmem:[#allocation13] sm:$0xff]
    %v543 = vld [vmem:[#allocation13 + $0x8] sm:$0xff]
    %v544 = vld [vmem:[#allocation13 + $0x10] sm:$0xff]
    %v545 = vld [vmem:[#allocation13 + $0x18] sm:$0xff]
    %v546 = vld [vmem:[#allocation13 + $0x20] sm:$0xff]
    %v547 = vld [vmem:[#allocation13 + $0x28] sm:$0xff]
    %v548 = vld [vmem:[#allocation13 + $0x30] sm:$0xff]
    %v549 = vld [vmem:[#allocation13 + $0x38] sm:$0xff]
    %550 = vmatprep.subr.mxu0 0.0
    %551 = vmatpush1.xpose.msra.mxu0 %v478
    %552 = vmatprep.subr.mxu0 0.0
    %553 = vmatpush1.xpose.msra.mxu0 %v479
    %554 = vmatprep.subr.mxu0 0.0
    %555 = vmatpush1.xpose.msra.mxu0 %v480
    %556 = vmatprep.subr.mxu0 0.0
    %557 = vmatpush1.xpose.msra.mxu0 %v481
    %558 = vmatprep.subr.mxu0 0.0
    %559 = vmatpush1.xpose.msra.mxu0 %v482
    %560 = vmatprep.subr.mxu0 0.0
    %561 = vmatpush1.xpose.msra.mxu0 %v483
    %562 = vmatprep.subr.mxu0 0.0
    %563 = vmatpush1.xpose.msra.mxu0 %v484
    %564 = vmatprep.subr.mxu0 0.0
    %565 = vmatpush1.xpose.msra.mxu0 %v485
    %566 = vmatprep.subr.mxu0 0.0
    %567 = vmatpush1.xpose.msra.mxu0 %v486
    %568 = vmatprep.subr.mxu0 0.0
    %569 = vmatpush1.xpose.msra.mxu0 %v487
    %570 = vmatprep.subr.mxu0 0.0
    %571 = vmatpush1.xpose.msra.mxu0 %v488
    %572 = vmatprep.subr.mxu0 0.0
    %573 = vmatpush1.xpose.msra.mxu0 %v489
    %574 = vmatprep.subr.mxu0 0.0
    %575 = vmatpush1.xpose.msra.mxu0 %v490
    %576 = vmatprep.subr.mxu0 0.0
    %577 = vmatpush1.xpose.msra.mxu0 %v491
    %578 = vmatprep.subr.mxu0 0.0
    %579 = vmatpush1.xpose.msra.mxu0 %v492
    %580 = vmatprep.subr.mxu0 0.0
    %581 = vmatpush1.xpose.msra.mxu0 %v493
    %582 = vmatprep.subr.mxu0 0.0
    %583 = vmatpush1.xpose.msra.mxu0 %v494
    %584 = vmatprep.subr.mxu0 0.0
    %585 = vmatpush1.xpose.msra.mxu0 %v495
    %586 = vmatprep.subr.mxu0 0.0
    %587 = vmatpush1.xpose.msra.mxu0 %v496
    %588 = vmatprep.subr.mxu0 0.0
    %589 = vmatpush1.xpose.msra.mxu0 %v497
    %590 = vmatprep.subr.mxu0 0.0
    %591 = vmatpush1.xpose.msra.mxu0 %v498
    %592 = vmatprep.subr.mxu0 0.0
    %593 = vmatpush1.xpose.msra.mxu0 %v499
    %594 = vmatprep.subr.mxu0 0.0
    %595 = vmatpush1.xpose.msra.mxu0 %v500
    %596 = vmatprep.subr.mxu0 0.0
    %597 = vmatpush1.xpose.msra.mxu0 %v501
    %598 = vmatprep.subr.mxu0 0.0
    %599 = vmatpush1.xpose.msra.mxu0 %v502
    %600 = vmatprep.subr.mxu0 0.0
    %601 = vmatpush1.xpose.msra.mxu0 %v503
    %602 = vmatprep.subr.mxu0 0.0
    %603 = vmatpush1.xpose.msra.mxu0 %v504
    %604 = vmatprep.subr.mxu0 0.0
    %605 = vmatpush1.xpose.msra.mxu0 %v505
    %606 = vmatprep.subr.mxu0 0.0
    %607 = vmatpush1.xpose.msra.mxu0 %v506
    %608 = vmatprep.subr.mxu0 0.0
    %609 = vmatpush1.xpose.msra.mxu0 %v507
    %610 = vmatprep.subr.mxu0 0.0
    %611 = vmatpush1.xpose.msra.mxu0 %v508
    %612 = vmatprep.subr.mxu0 0.0
    %613 = vmatpush1.xpose.msra.mxu0 %v509
    %614 = vmatprep.mubr.f32.mxu0 0.0
    %615 = vmatmul.mubr.f32.gmra.mrb[0].mxu0 %v442
    %v616 = vpop.f32.mrb[0].mxu0
    %v617 = vadd.f32 %v542, %v616
    %v618 = vpop.f32.mrb[0].mxu0
    %v619 = vadd.f32 %v543, %v618
    %620 = vmatprep.mubr.f32.mxu0 0.0
    %621 = vmatmul.mubr.f32.gmra.mrb[0].mxu0 %v443
    %v622 = vpop.f32.mrb[0].mxu0
    %v623 = vadd.f32 %v544, %v622
    %v624 = vpop.f32.mrb[0].mxu0
    %v625 = vadd.f32 %v545, %v624
    %626 = vmatprep.mubr.f32.mxu0 0.0
    %627 = vmatmul.mubr.f32.gmra.mrb[0].mxu0 %v444
    %v628 = vpop.f32.mrb[0].mxu0
    %v629 = vadd.f32 %v546, %v628
    %v630 = vpop.f32.mrb[0].mxu0
    %v631 = vadd.f32 %v547, %v630
    %632 = vmatprep.mubr.f32.mxu0 0.0
    %633 = vmatmul.mubr.f32.gmra.mrb[0].mxu0 %v445
    %v634 = vpop.f32.mrb[0].mxu0
    %v635 = vadd.f32 %v548, %v634
    %v636 = vpop.f32.mrb[0].mxu0
    %v637 = vadd.f32 %v549, %v636
    %638 = vdwg.mxu0
    %v639 = vmax.f32 %v617, %v619
    %640 = vmax.xlane.f32.xlu0 %v639
    %v641 = vpop.xlane.xlu0 %640
    %v642 = vmax.f32 %v623, %v625
    %643 = vmax.xlane.f32.xlu0 %v642
    %v644 = vpop.xlane.xlu0 %643
    %v645 = vmax.f32 %v629, %v631
    %646 = vmax.xlane.f32.xlu0 %v645
    %v647 = vpop.xlane.xlu0 %646
    %v648 = vmax.f32 %v635, %v637
    %649 = vmax.xlane.f32.xlu0 %v648
    %v650 = vpop.xlane.xlu0 %649
    %v651 = vsub.f32 %v617, %v641
    %v652 = vsub.f32 %v619, %v641
    %v653 = vsub.f32 %v623, %v644
    %v654 = vsub.f32 %v625, %v644
    %v655 = vsub.f32 %v629, %v647
    %v656 = vsub.f32 %v631, %v647
    %v657 = vsub.f32 %v635, %v650
    %v658 = vsub.f32 %v637, %v650
    %v659 = vmul.f32 %v651, 1.442695
    %v660 = vpow.pop %v659
    %v661 = vmul.f32 %v652, 1.442695
    %v662 = vpow.pop %v661
    %v663 = vmul.f32 %v653, 1.442695
    %v664 = vpow.pop %v663
    %v665 = vmul.f32 %v654, 1.442695
    %v666 = vpow.pop %v665
    %v667 = vmul.f32 %v655, 1.442695
    %v668 = vpow.pop %v667
    %v669 = vmul.f32 %v656, 1.442695
    %v670 = vpow.pop %v669
    %v671 = vmul.f32 %v657, 1.442695
    %v672 = vpow.pop %v671
    %v673 = vmul.f32 %v658, 1.442695
    %v674 = vpow.pop %v673
    %675 = vmatprep.subr.mxu0 0.0
    %676 = vmatpush1.msra.mxu0 %v510
    %677 = vmatprep.subr.mxu0 0.0
    %678 = vmatpush1.msra.mxu0 %v511
    %679 = vmatprep.subr.mxu0 0.0
    %680 = vmatpush1.msra.mxu0 %v512
    %681 = vmatprep.subr.mxu0 0.0
    %682 = vmatpush1.msra.mxu0 %v513
    %683 = vmatprep.subr.mxu0 0.0
    %684 = vmatpush1.msra.mxu0 %v514
    %685 = vmatprep.subr.mxu0 0.0
    %686 = vmatpush1.msra.mxu0 %v515
    %687 = vmatprep.subr.mxu0 0.0
    %688 = vmatpush1.msra.mxu0 %v516
    %689 = vmatprep.subr.mxu0 0.0
    %690 = vmatpush1.msra.mxu0 %v517
    %691 = vmatprep.subr.mxu0 0.0
    %692 = vmatpush1.msra.mxu0 %v518
    %693 = vmatprep.subr.mxu0 0.0
    %694 = vmatpush1.msra.mxu0 %v519
    %695 = vmatprep.subr.mxu0 0.0
    %696 = vmatpush1.msra.mxu0 %v520
    %697 = vmatprep.subr.mxu0 0.0
    %698 = vmatpush1.msra.mxu0 %v521
    %699 = vmatprep.subr.mxu0 0.0
    %700 = vmatpush1.msra.mxu0 %v522
    %701 = vmatprep.subr.mxu0 0.0
    %702 = vmatpush1.msra.mxu0 %v523
    %703 = vmatprep.subr.mxu0 0.0
    %704 = vmatpush1.msra.mxu0 %v524
    %705 = vmatprep.subr.mxu0 0.0
    %706 = vmatpush1.msra.mxu0 %v525
    %707 = vmatprep.subr.mxu0 0.0
    %708 = vmatpush1.msra.mxu0 %v526
    %709 = vmatprep.subr.mxu0 0.0
    %710 = vmatpush1.msra.mxu0 %v527
    %711 = vmatprep.subr.mxu0 0.0
    %712 = vmatpush1.msra.mxu0 %v528
    %713 = vmatprep.subr.mxu0 0.0
    %714 = vmatpush1.msra.mxu0 %v529
    %715 = vmatprep.subr.mxu0 0.0
    %716 = vmatpush1.msra.mxu0 %v530
    %717 = vmatprep.subr.mxu0 0.0
    %718 = vmatpush1.msra.mxu0 %v531
    %719 = vmatprep.subr.mxu0 0.0
    %720 = vmatpush1.msra.mxu0 %v532
    %721 = vmatprep.subr.mxu0 0.0
    %722 = vmatpush1.msra.mxu0 %v533
    %723 = vmatprep.subr.mxu0 0.0
    %724 = vmatpush1.msra.mxu0 %v534
    %725 = vmatprep.subr.mxu0 0.0
    %726 = vmatpush1.msra.mxu0 %v535
    %727 = vmatprep.subr.mxu0 0.0
    %728 = vmatpush1.msra.mxu0 %v536
    %729 = vmatprep.subr.mxu0 0.0
    %730 = vmatpush1.msra.mxu0 %v537
    %731 = vmatprep.subr.mxu0 0.0
    %732 = vmatpush1.msra.mxu0 %v538
    %733 = vmatprep.subr.mxu0 0.0
    %734 = vmatpush1.msra.mxu0 %v539
    %735 = vmatprep.subr.mxu0 0.0
    %736 = vmatpush1.msra.mxu0 %v540
    %737 = vmatprep.subr.mxu0 0.0
    %738 = vmatpush1.msra.mxu0 %v541
    %739 = vmatprep.mubr.f32.mxu0 %v662
    %740 = vmatmul.mubr.f32.gmra.mrb[0].mxu0 %v660
    %v741 = vpop.f32.mrb[0].mxu0
    %v742 = vadd.f32 0.0, %v741
    %v743 = vpop.f32.mrb[0].mxu0
    %744 = vmatprep.mubr.f32.mxu0 %v666
    %745 = vmatmul.mubr.f32.gmra.mrb[0].mxu0 %v664
    %v746 = vpop.f32.mrb[0].mxu0
    %v747 = vadd.f32 0.0, %v746
    %v748 = vpop.f32.mrb[0].mxu0
    %749 = vmatprep.mubr.f32.mxu0 %v670
    %750 = vmatmul.mubr.f32.gmra.mrb[0].mxu0 %v668
    %v751 = vpop.f32.mrb[0].mxu0
    %v752 = vadd.f32 0.0, %v751
    %v753 = vpop.f32.mrb[0].mxu0
    %754 = vmatprep.mubr.f32.mxu0 %v674
    %755 = vmatmul.mubr.f32.gmra.mrb[0].mxu0 %v672
    %v756 = vpop.f32.mrb[0].mxu0
    %v757 = vadd.f32 0.0, %v756
    %v758 = vpop.f32.mrb[0].mxu0
    %759 = vdwg.mxu0
    %760 = vmatprep.subr.mxu0 0.0
    %761 = vmatpush1.msra.mxu0 %v446
    %762 = vmatprep.subr.mxu0 0.0
    %763 = vmatpush1.msra.mxu0 %v447
    %764 = vmatprep.subr.mxu0 0.0
    %765 = vmatpush1.msra.mxu0 %v448
    %766 = vmatprep.subr.mxu0 0.0
    %767 = vmatpush1.msra.mxu0 %v449
    %768 = vmatprep.subr.mxu0 0.0
    %769 = vmatpush1.msra.mxu0 %v450
    %770 = vmatprep.subr.mxu0 0.0
    %771 = vmatpush1.msra.mxu0 %v451
    %772 = vmatprep.subr.mxu0 0.0
    %773 = vmatpush1.msra.mxu0 %v452
    %774 = vmatprep.subr.mxu0 0.0
    %775 = vmatpush1.msra.mxu0 %v453
    %776 = vmatprep.subr.mxu0 0.0
    %777 = vmatpush1.msra.mxu0 %v454
    %778 = vmatprep.subr.mxu0 0.0
    %779 = vmatpush1.msra.mxu0 %v455
    %780 = vmatprep.subr.mxu0 0.0
    %781 = vmatpush1.msra.mxu0 %v456
    %782 = vmatprep.subr.mxu0 0.0
    %783 = vmatpush1.msra.mxu0 %v457
    %784 = vmatprep.subr.mxu0 0.0
    %785 = vmatpush1.msra.mxu0 %v458
    %786 = vmatprep.subr.mxu0 0.0
    %787 = vmatpush1.msra.mxu0 %v459
    %788 = vmatprep.subr.mxu0 0.0
    %789 = vmatpush1.msra.mxu0 %v460
    %790 = vmatprep.subr.mxu0 0.0
    %791 = vmatpush1.msra.mxu0 %v461
    %792 = vmatprep.subr.mxu0 0.0
    %793 = vmatpush1.msra.mxu0 %v462
    %794 = vmatprep.subr.mxu0 0.0
    %795 = vmatpush1.msra.mxu0 %v463
    %796 = vmatprep.subr.mxu0 0.0
    %797 = vmatpush1.msra.mxu0 %v464
    %798 = vmatprep.subr.mxu0 0.0
    %799 = vmatpush1.msra.mxu0 %v465
    %800 = vmatprep.subr.mxu0 0.0
    %801 = vmatpush1.msra.mxu0 %v466
    %802 = vmatprep.subr.mxu0 0.0
    %803 = vmatpush1.msra.mxu0 %v467
    %804 = vmatprep.subr.mxu0 0.0
    %805 = vmatpush1.msra.mxu0 %v468
    %806 = vmatprep.subr.mxu0 0.0
    %807 = vmatpush1.msra.mxu0 %v469
    %808 = vmatprep.subr.mxu0 0.0
    %809 = vmatpush1.msra.mxu0 %v470
    %810 = vmatprep.subr.mxu0 0.0
    %811 = vmatpush1.msra.mxu0 %v471
    %812 = vmatprep.subr.mxu0 0.0
    %813 = vmatpush1.msra.mxu0 %v472
    %814 = vmatprep.subr.mxu0 0.0
    %815 = vmatpush1.msra.mxu0 %v473
    %816 = vmatprep.subr.mxu0 0.0
    %817 = vmatpush1.msra.mxu0 %v474
    %818 = vmatprep.subr.mxu0 0.0
    %819 = vmatpush1.msra.mxu0 %v475
    %820 = vmatprep.subr.mxu0 0.0
    %821 = vmatpush1.msra.mxu0 %v476
    %822 = vmatprep.subr.mxu0 0.0
    %823 = vmatpush1.msra.mxu0 %v477
    %824 = vmatprep.mubr.f32.mxu0 %v662
    %825 = vmatmul.mubr.f32.gmra.mrb[0].mxu0 %v660
    %v826 = vpop.f32.mrb[0].mxu0
    %v827 = vadd.f32 0.0, %v826
    %v828 = vpop.f32.mrb[0].mxu0
    %829 = vmatprep.mubr.f32.mxu0 %v666
    %830 = vmatmul.mubr.f32.gmra.mrb[0].mxu0 %v664
    %v831 = vpop.f32.mrb[0].mxu0
    %v832 = vadd.f32 0.0, %v831
    %v833 = vpop.f32.mrb[0].mxu0
    %834 = vmatprep.mubr.f32.mxu0 %v670
    %835 = vmatmul.mubr.f32.gmra.mrb[0].mxu0 %v668
    %v836 = vpop.f32.mrb[0].mxu0
    %v837 = vadd.f32 0.0, %v836
    %v838 = vpop.f32.mrb[0].mxu0
    %839 = vmatprep.mubr.f32.mxu0 %v674
    %840 = vmatmul.mubr.f32.gmra.mrb[0].mxu0 %v672
    %v841 = vpop.f32.mrb[0].mxu0
    %v842 = vadd.f32 0.0, %v841
    %v843 = vpop.f32.mrb[0].mxu0
    %844 = vdwg.mxu0
    %v845 = vmax.f32 %v827, 1e-30
    %v846 = vmax.f32 %v832, 1e-30
    %v847 = vmax.f32 %v837, 1e-30
    %v848 = vmax.f32 %v842, 1e-30
    %v849 = vrcp.pop %v845
    %v850 = vmul.f32 %v742, %v849
    %v851 = vrcp.pop %v846
    %v852 = vmul.f32 %v747, %v851
    %v853 = vrcp.pop %v847
    %v854 = vmul.f32 %v752, %v853
    %v855 = vrcp.pop %v848
    %v856 = vmul.f32 %v757, %v855
    %v857 = vpack.c.bf16 %v852, %v850
    %v858 = vpack.c.bf16 %v856, %v854
    %v859 = vld [vmem:[#allocation10] sm:$0xf]
    %v860 = vld [vmem:[#allocation10 + $0x4] sm:$0xf]
    %v861 = vld [vmem:[#allocation10 + $0x8] sm:$0xf]
    %v862 = vld [vmem:[#allocation10 + $0xc] sm:$0xf]
    %v863 = vld [vmem:[#allocation10 + $0x10] sm:$0xf]
    %v864 = vld [vmem:[#allocation10 + $0x14] sm:$0xf]
    %v865 = vld [vmem:[#allocation10 + $0x18] sm:$0xf]
    %v866 = vld [vmem:[#allocation10 + $0x1c] sm:$0xf]
    %v867 = vld [vmem:[#allocation10 + $0x20] sm:$0xf]
    %v868 = vld [vmem:[#allocation10 + $0x24] sm:$0xf]
    %v869 = vld [vmem:[#allocation10 + $0x28] sm:$0xf]
    %v870 = vld [vmem:[#allocation10 + $0x2c] sm:$0xf]
    %v871 = vld [vmem:[#allocation10 + $0x30] sm:$0xf]
    %v872 = vld [vmem:[#allocation10 + $0x34] sm:$0xf]
    %v873 = vld [vmem:[#allocation10 + $0x38] sm:$0xf]
    %v874 = vld [vmem:[#allocation10 + $0x3c] sm:$0xf]
    %v875 = vld [vmem:[%s4] sm:$0x1]
    %v877 = vlaneseq
    %v878 = vshrl.u32 %v877, 7
    %v879 = vsub.s32 0, %v878
    %v880 = vrot.slane %v875, %v879
    %v898 = vunpack.c.l.b16 %v859
    %v899 = vunpack.c.l.b16 %v860
    %v900 = vunpack.c.l.b16 %v861
    %v901 = vunpack.c.l.b16 %v862
    %v902 = vunpack.c.l.b16 %v863
    %v903 = vunpack.c.l.b16 %v864
    %v904 = vunpack.c.l.b16 %v865
    %v905 = vunpack.c.l.b16 %v866
    %v906 = vunpack.c.l.b16 %v867
    %v907 = vunpack.c.l.b16 %v868
    %v908 = vunpack.c.l.b16 %v869
    %v909 = vunpack.c.l.b16 %v870
    %v910 = vunpack.c.l.b16 %v871
    %v911 = vunpack.c.l.b16 %v872
    %v912 = vunpack.c.l.b16 %v873
    %v913 = vunpack.c.l.b16 %v874
    %v914 = vpack.c.b16 %v899, %v898
    %v915 = vpack.c.b16 %v901, %v900
    %v916 = vpack.c.b16 %v903, %v902
    %v917 = vpack.c.b16 %v905, %v904
    %v918 = vpack.c.b16 %v907, %v906
    %v919 = vpack.c.b16 %v909, %v908
    %v920 = vpack.c.b16 %v911, %v910
    %v921 = vpack.c.b16 %v913, %v912
    %930 = vmatprep.subr.bf16.mxu0 0
    %931 = vmatpush1.bf16.msra.mxu0 %v914
    %932 = vmatprep.subr.bf16.mxu0 0
    %933 = vmatpush1.bf16.msra.mxu0 %v915
    %934 = vmatprep.subr.bf16.mxu0 0
    %935 = vmatpush1.bf16.msra.mxu0 %v916
    %936 = vmatprep.subr.bf16.mxu0 0
    %937 = vmatpush1.bf16.msra.mxu0 %v917
    %938 = vmatprep.subr.bf16.mxu0 0
    %939 = vmatpush1.bf16.msra.mxu0 %v918
    %940 = vmatprep.subr.bf16.mxu0 0
    %941 = vmatpush1.bf16.msra.mxu0 %v919
    %942 = vmatprep.subr.bf16.mxu0 0
    %943 = vmatpush1.bf16.msra.mxu0 %v920
    %944 = vmatprep.subr.bf16.mxu0 0
    %945 = vmatpush1.bf16.msra.mxu0 %v921
    %946 = vmatprep.subr.bf16.mxu0 0
    %947 = vmatpush1.bf16.msra.mxu0 0
    %948 = vmatprep.subr.bf16.mxu0 0
    %949 = vmatpush1.bf16.msra.mxu0 0
    %950 = vmatprep.subr.bf16.mxu0 0
    %951 = vmatpush1.bf16.msra.mxu0 0
    %952 = vmatprep.subr.bf16.mxu0 0
    %953 = vmatpush1.bf16.msra.mxu0 0
    %954 = vmatprep.subr.bf16.mxu0 0
    %955 = vmatpush1.bf16.msra.mxu0 0
    %956 = vmatprep.subr.bf16.mxu0 0
    %957 = vmatpush1.bf16.msra.mxu0 0
    %958 = vmatprep.subr.bf16.mxu0 0
    %959 = vmatpush1.bf16.msra.mxu0 0
    %960 = vmatprep.subr.bf16.mxu0 0
    %961 = vmatpush1.bf16.msra.mxu0 0
    %962 = vmatprep.mubr.bf16.mxu0 0
    %963 = vmatmul.mubr.bf16.gmra.mrb[0].mxu0 %v857
    %v964 = vpop.f32.mrb[0].mxu0
    %v965 = vadd.f32 %v880, %v964
    %v966 = vpop.f32.mrb[0].mxu0
    %v967 = vpop.f32.mrb[0].mxu0
    %v968 = vadd.f32 %v880, %v967
    %v969 = vpop.f32.mrb[0].mxu0
    %970 = vmatprep.mubr.bf16.mxu0 0
    %971 = vmatmul.mubr.bf16.gmra.mrb[0].mxu0 %v858
    %v972 = vpop.f32.mrb[0].mxu0
    %v973 = vadd.f32 %v880, %v972
    %v974 = vpop.f32.mrb[0].mxu0
    %v975 = vpop.f32.mrb[0].mxu0
    %v976 = vadd.f32 %v880, %v975
    %v977 = vpop.f32.mrb[0].mxu0
    %978 = vdwg.mxu0
    %v979 = vadd.f32 %v157, %v965
    %v980 = vadd.f32 %v158, %v968
    %v981 = vadd.f32 %v159, %v973
    %v982 = vadd.f32 %v160, %v976
    %v983 = vadd.f32 %v979, %v980
    %v984 = vrot.slane %v983, 4
    %v985 = vadd.f32 %v983, %v984
    %v986 = vrot.slane %v985, 2
    %v987 = vadd.f32 %v985, %v986
    %v988 = vrot.slane %v987, 1
    %v989 = vadd.f32 %v987, %v988
    %v990 = vadd.f32 %v981, %v982
    %v991 = vrot.slane %v990, 4
    %v992 = vadd.f32 %v990, %v991
    %v993 = vrot.slane %v992, 2
    %v994 = vadd.f32 %v992, %v993
    %v995 = vrot.slane %v994, 1
    %v996 = vadd.f32 %v994, %v995
    %v997 = vrcp.pop 16.0
    %v998 = vmul.f32 %v989, %v997
    %v999 = vmul.f32 %v996, %v997
    %v1000 = vsub.f32 %v979, %v998
    %v1001 = vsub.f32 %v980, %v998
    %v1002 = vsub.f32 %v981, %v999
    %v1003 = vsub.f32 %v982, %v999
    %v1004 = vmul.f32 %v1000, %v1000
    %v1005 = vmul.f32 %v1001, %v1001
    %v1006 = vmul.f32 %v1002, %v1002
    %v1007 = vmul.f32 %v1003, %v1003
    %v1008 = vadd.f32 %v1004, %v1005
    %v1009 = vrot.slane %v1008, 4
    %v1010 = vadd.f32 %v1008, %v1009
    %v1011 = vrot.slane %v1010, 2
    %v1012 = vadd.f32 %v1010, %v1011
    %v1013 = vrot.slane %v1012, 1
    %v1014 = vadd.f32 %v1012, %v1013
    %v1015 = vadd.f32 %v1006, %v1007
    %v1016 = vrot.slane %v1015, 4
    %v1017 = vadd.f32 %v1015, %v1016
    %v1018 = vrot.slane %v1017, 2
    %v1019 = vadd.f32 %v1017, %v1018
    %v1020 = vrot.slane %v1019, 1
    %v1021 = vadd.f32 %v1019, %v1020
    %v1022 = vmul.f32 %v1014, %v997
    %v1023 = vmul.f32 %v1021, %v997
    %v1024 = vadd.f32 %v1022, 1e-05
    %v1025 = vadd.f32 %v1023, 1e-05
    %v1026 = vrsqrt.pop %v1024
    %v1027 = vrsqrt.pop %v1025
    %v1028 = vmul.f32 %v1000, %v1026
    %v1029 = vmul.f32 %v1001, %v1026
    %v1030 = vmul.f32 %v1002, %v1027
    %v1031 = vmul.f32 %v1003, %v1027
    %v1032 = vld [vmem:[%s5] sm:$0x1]
    %v1034 = vlaneseq
    %v1035 = vshrl.u32 %v1034, 7
    %v1036 = vsub.s32 0, %v1035
    %v1037 = vrot.slane %v1032, %v1036
    %v1039 = vmul.f32 %v1028, %v1037
    %v1040 = vmul.f32 %v1029, %v1037
    %v1041 = vmul.f32 %v1030, %v1037
    %v1042 = vmul.f32 %v1031, %v1037
    %v1043 = vld [vmem:[%s6] sm:$0x1]
    %v1045 = vlaneseq
    %v1046 = vshrl.u32 %v1045, 7
    %v1047 = vsub.s32 0, %v1046
    %v1048 = vrot.slane %v1043, %v1047
    %v1050 = vadd.f32 %v1039, %v1048
    %v1051 = vadd.f32 %v1040, %v1048
    %v1052 = vadd.f32 %v1041, %v1048
    %v1053 = vadd.f32 %v1042, %v1048
    %s1054 = smul.u32 4, 16
    %s1055 = smul.u32 %s1054, 8
    %s1056 = sshll.u32 %s1055, 4
    %1057 = dma.done [#allocation4], %s1056
    %v1058 = vpack.c.bf16 %v1051, %v1050
    %v1059 = vpack.c.bf16 %v1053, %v1052
    %v1060 = vld [vmem:[#allocation2] sm:$0xff]
    %v1061 = vld [vmem:[#allocation2 + $0x8] sm:$0xff]
    %v1062 = vld [vmem:[#allocation2 + $0x10] sm:$0xff]
    %v1063 = vld [vmem:[#allocation2 + $0x18] sm:$0xff]
    %v1064 = vld [vmem:[#allocation2 + $0x20] sm:$0xff]
    %v1065 = vld [vmem:[#allocation2 + $0x28] sm:$0xff]
    %v1066 = vld [vmem:[#allocation2 + $0x30] sm:$0xff]
    %v1067 = vld [vmem:[#allocation2 + $0x38] sm:$0xff]
    %v1068 = vld [vmem:[#allocation2 + $0x40] sm:$0xff]
    %v1069 = vld [vmem:[#allocation2 + $0x48] sm:$0xff]
    %v1070 = vld [vmem:[#allocation2 + $0x50] sm:$0xff]
    %v1071 = vld [vmem:[#allocation2 + $0x58] sm:$0xff]
    %v1072 = vld [vmem:[#allocation2 + $0x60] sm:$0xff]
    %v1073 = vld [vmem:[#allocation2 + $0x68] sm:$0xff]
    %v1074 = vld [vmem:[#allocation2 + $0x70] sm:$0xff]
    %v1075 = vld [vmem:[#allocation2 + $0x78] sm:$0xff]
    %v1076 = vld [vmem:[#allocation2 + $0x80] sm:$0xff]
    %v1077 = vld [vmem:[#allocation2 + $0x88] sm:$0xff]
    %v1078 = vld [vmem:[#allocation2 + $0x90] sm:$0xff]
    %v1079 = vld [vmem:[#allocation2 + $0x98] sm:$0xff]
    %v1080 = vld [vmem:[#allocation2 + $0xa0] sm:$0xff]
    %v1081 = vld [vmem:[#allocation2 + $0xa8] sm:$0xff]
    %v1082 = vld [vmem:[#allocation2 + $0xb0] sm:$0xff]
    %v1083 = vld [vmem:[#allocation2 + $0xb8] sm:$0xff]
    %v1084 = vld [vmem:[#allocation2 + $0xc0] sm:$0xff]
    %v1085 = vld [vmem:[#allocation2 + $0xc8] sm:$0xff]
    %v1086 = vld [vmem:[#allocation2 + $0xd0] sm:$0xff]
    %v1087 = vld [vmem:[#allocation2 + $0xd8] sm:$0xff]
    %v1088 = vld [vmem:[#allocation2 + $0xe0] sm:$0xff]
    %v1089 = vld [vmem:[#allocation2 + $0xe8] sm:$0xff]
    %v1090 = vld [vmem:[#allocation2 + $0xf0] sm:$0xff]
    %v1091 = vld [vmem:[#allocation2 + $0xf8] sm:$0xff]
    %v1092 = vld [vmem:[#allocation2 + $0x100] sm:$0xff]
    %v1093 = vld [vmem:[#allocation2 + $0x108] sm:$0xff]
    %v1094 = vld [vmem:[#allocation2 + $0x110] sm:$0xff]
    %v1095 = vld [vmem:[#allocation2 + $0x118] sm:$0xff]
    %v1096 = vld [vmem:[#allocation2 + $0x120] sm:$0xff]
    %v1097 = vld [vmem:[#allocation2 + $0x128] sm:$0xff]
    %v1098 = vld [vmem:[#allocation2 + $0x130] sm:$0xff]
    %v1099 = vld [vmem:[#allocation2 + $0x138] sm:$0xff]
    %v1100 = vld [vmem:[#allocation2 + $0x140] sm:$0xff]
    %v1101 = vld [vmem:[#allocation2 + $0x148] sm:$0xff]
    %v1102 = vld [vmem:[#allocation2 + $0x150] sm:$0xff]
    %v1103 = vld [vmem:[#allocation2 + $0x158] sm:$0xff]
    %v1104 = vld [vmem:[#allocation2 + $0x160] sm:$0xff]
    %v1105 = vld [vmem:[#allocation2 + $0x168] sm:$0xff]
    %v1106 = vld [vmem:[#allocation2 + $0x170] sm:$0xff]
    %v1107 = vld [vmem:[#allocation2 + $0x178] sm:$0xff]
    %v1108 = vld [vmem:[#allocation2 + $0x180] sm:$0xff]
    %v1109 = vld [vmem:[#allocation2 + $0x188] sm:$0xff]
    %v1110 = vld [vmem:[#allocation2 + $0x190] sm:$0xff]
    %v1111 = vld [vmem:[#allocation2 + $0x198] sm:$0xff]
    %v1112 = vld [vmem:[#allocation2 + $0x1a0] sm:$0xff]
    %v1113 = vld [vmem:[#allocation2 + $0x1a8] sm:$0xff]
    %v1114 = vld [vmem:[#allocation2 + $0x1b0] sm:$0xff]
    %v1115 = vld [vmem:[#allocation2 + $0x1b8] sm:$0xff]
    %v1116 = vld [vmem:[#allocation2 + $0x1c0] sm:$0xff]
    %v1117 = vld [vmem:[#allocation2 + $0x1c8] sm:$0xff]
    %v1118 = vld [vmem:[#allocation2 + $0x1d0] sm:$0xff]
    %v1119 = vld [vmem:[#allocation2 + $0x1d8] sm:$0xff]
    %v1120 = vld [vmem:[#allocation2 + $0x1e0] sm:$0xff]
    %v1121 = vld [vmem:[#allocation2 + $0x1e8] sm:$0xff]
    %v1122 = vld [vmem:[#allocation2 + $0x1f0] sm:$0xff]
    %v1123 = vld [vmem:[#allocation2 + $0x1f8] sm:$0xff]
    %1124 = vmatprep.subr.bf16.mxu0 %v1061
    %1125 = vmatpush1.bf16.msra.mxu0 %v1060
    %1126 = vmatprep.subr.bf16.mxu0 %v1069
    %1127 = vmatpush1.bf16.msra.mxu0 %v1068
    %1128 = vmatprep.subr.bf16.mxu0 %v1077
    %1129 = vmatpush1.bf16.msra.mxu0 %v1076
    %1130 = vmatprep.subr.bf16.mxu0 %v1085
    %1131 = vmatpush1.bf16.msra.mxu0 %v1084
    %1132 = vmatprep.subr.bf16.mxu0 %v1093
    %1133 = vmatpush1.bf16.msra.mxu0 %v1092
    %1134 = vmatprep.subr.bf16.mxu0 %v1101
    %1135 = vmatpush1.bf16.msra.mxu0 %v1100
    %1136 = vmatprep.subr.bf16.mxu0 %v1109
    %1137 = vmatpush1.bf16.msra.mxu0 %v1108
    %1138 = vmatprep.subr.bf16.mxu0 %v1117
    %1139 = vmatpush1.bf16.msra.mxu0 %v1116
    %1140 = vmatprep.subr.bf16.mxu0 0
    %1141 = vmatpush1.bf16.msra.mxu0 0
    %1142 = vmatprep.subr.bf16.mxu0 0
    %1143 = vmatpush1.bf16.msra.mxu0 0
    %1144 = vmatprep.subr.bf16.mxu0 0
    %1145 = vmatpush1.bf16.msra.mxu0 0
    %1146 = vmatprep.subr.bf16.mxu0 0
    %1147 = vmatpush1.bf16.msra.mxu0 0
    %1148 = vmatprep.subr.bf16.mxu0 0
    %1149 = vmatpush1.bf16.msra.mxu0 0
    %1150 = vmatprep.subr.bf16.mxu0 0
    %1151 = vmatpush1.bf16.msra.mxu0 0
    %1152 = vmatprep.subr.bf16.mxu0 0
    %1153 = vmatpush1.bf16.msra.mxu0 0
    %1154 = vmatprep.subr.bf16.mxu0 0
    %1155 = vmatpush1.bf16.msra.mxu0 0
    %1156 = vmatprep.mubr.bf16.mxu0 0
    %1157 = vmatmul.mubr.bf16.gmra.mrb[0].mxu0 %v1058
    %v1158 = vpop.f32.mrb[0].mxu0
    %v1159 = vadd.f32 0.0, %v1158
    %v1160 = vpop.f32.mrb[0].mxu0
    %v1161 = vadd.f32 0.0, %v1160
    %v1162 = vpop.f32.mrb[0].mxu0
    %v1163 = vadd.f32 0.0, %v1162
    %v1164 = vpop.f32.mrb[0].mxu0
    %v1165 = vadd.f32 0.0, %v1164
    %1166 = vmatprep.mubr.bf16.mxu0 0
    %1167 = vmatmul.mubr.bf16.gmra.mrb[0].mxu0 %v1059
    %v1168 = vpop.f32.mrb[0].mxu0
    %v1169 = vadd.f32 0.0, %v1168
    %v1170 = vpop.f32.mrb[0].mxu0
    %v1171 = vadd.f32 0.0, %v1170
    %v1172 = vpop.f32.mrb[0].mxu0
    %v1173 = vadd.f32 0.0, %v1172
    %v1174 = vpop.f32.mrb[0].mxu0
    %v1175 = vadd.f32 0.0, %v1174
    %1176 = vdwg.mxu0
    %1177 = vmatprep.subr.bf16.mxu0 %v1063
    %1178 = vmatpush1.bf16.msra.mxu0 %v1062
    %1179 = vmatprep.subr.bf16.mxu0 %v1071
    %1180 = vmatpush1.bf16.msra.mxu0 %v1070
    %1181 = vmatprep.subr.bf16.mxu0 %v1079
    %1182 = vmatpush1.bf16.msra.mxu0 %v1078
    %1183 = vmatprep.subr.bf16.mxu0 %v1087
    %1184 = vmatpush1.bf16.msra.mxu0 %v1086
    %1185 = vmatprep.subr.bf16.mxu0 %v1095
    %1186 = vmatpush1.bf16.msra.mxu0 %v1094
    %1187 = vmatprep.subr.bf16.mxu0 %v1103
    %1188 = vmatpush1.bf16.msra.mxu0 %v1102
    %1189 = vmatprep.subr.bf16.mxu0 %v1111
    %1190 = vmatpush1.bf16.msra.mxu0 %v1110
    %1191 = vmatprep.subr.bf16.mxu0 %v1119
    %1192 = vmatpush1.bf16.msra.mxu0 %v1118
    %1193 = vmatprep.subr.bf16.mxu0 0
    %1194 = vmatpush1.bf16.msra.mxu0 0
    %1195 = vmatprep.subr.bf16.mxu0 0
    %1196 = vmatpush1.bf16.msra.mxu0 0
    %1197 = vmatprep.subr.bf16.mxu0 0
    %1198 = vmatpush1.bf16.msra.mxu0 0
    %1199 = vmatprep.subr.bf16.mxu0 0
    %1200 = vmatpush1.bf16.msra.mxu0 0
    %1201 = vmatprep.subr.bf16.mxu0 0
    %1202 = vmatpush1.bf16.msra.mxu0 0
    %1203 = vmatprep.subr.bf16.mxu0 0
    %1204 = vmatpush1.bf16.msra.mxu0 0
    %1205 = vmatprep.subr.bf16.mxu0 0
    %1206 = vmatpush1.bf16.msra.mxu0 0
    %1207 = vmatprep.subr.bf16.mxu0 0
    %1208 = vmatpush1.bf16.msra.mxu0 0
    %1209 = vmatprep.mubr.bf16.mxu0 0
    %1210 = vmatmul.mubr.bf16.gmra.mrb[0].mxu0 %v1058
    %v1211 = vpop.f32.mrb[0].mxu0
    %v1212 = vadd.f32 0.0, %v1211
    %v1213 = vpop.f32.mrb[0].mxu0
    %v1214 = vadd.f32 0.0, %v1213
    %v1215 = vpop.f32.mrb[0].mxu0
    %v1216 = vadd.f32 0.0, %v1215
    %v1217 = vpop.f32.mrb[0].mxu0
    %v1218 = vadd.f32 0.0, %v1217
    %1219 = vmatprep.mubr.bf16.mxu0 0
    %1220 = vmatmul.mubr.bf16.gmra.mrb[0].mxu0 %v1059
    %v1221 = vpop.f32.mrb[0].mxu0
    %v1222 = vadd.f32 0.0, %v1221
    %v1223 = vpop.f32.mrb[0].mxu0
    %v1224 = vadd.f32 0.0, %v1223
    %v1225 = vpop.f32.mrb[0].mxu0
    %v1226 = vadd.f32 0.0, %v1225
    %v1227 = vpop.f32.mrb[0].mxu0
    %v1228 = vadd.f32 0.0, %v1227
    %1229 = vdwg.mxu0
    %1230 = vmatprep.subr.bf16.mxu0 %v1065
    %1231 = vmatpush1.bf16.msra.mxu0 %v1064
    %1232 = vmatprep.subr.bf16.mxu0 %v1073
    %1233 = vmatpush1.bf16.msra.mxu0 %v1072
    %1234 = vmatprep.subr.bf16.mxu0 %v1081
    %1235 = vmatpush1.bf16.msra.mxu0 %v1080
    %1236 = vmatprep.subr.bf16.mxu0 %v1089
    %1237 = vmatpush1.bf16.msra.mxu0 %v1088
    %1238 = vmatprep.subr.bf16.mxu0 %v1097
    %1239 = vmatpush1.bf16.msra.mxu0 %v1096
    %1240 = vmatprep.subr.bf16.mxu0 %v1105
    %1241 = vmatpush1.bf16.msra.mxu0 %v1104
    %1242 = vmatprep.subr.bf16.mxu0 %v1113
    %1243 = vmatpush1.bf16.msra.mxu0 %v1112
    %1244 = vmatprep.subr.bf16.mxu0 %v1121
    %1245 = vmatpush1.bf16.msra.mxu0 %v1120
    %1246 = vmatprep.subr.bf16.mxu0 0
    %1247 = vmatpush1.bf16.msra.mxu0 0
    %1248 = vmatprep.subr.bf16.mxu0 0
    %1249 = vmatpush1.bf16.msra.mxu0 0
    %1250 = vmatprep.subr.bf16.mxu0 0
    %1251 = vmatpush1.bf16.msra.mxu0 0
    %1252 = vmatprep.subr.bf16.mxu0 0
    %1253 = vmatpush1.bf16.msra.mxu0 0
    %1254 = vmatprep.subr.bf16.mxu0 0
    %1255 = vmatpush1.bf16.msra.mxu0 0
    %1256 = vmatprep.subr.bf16.mxu0 0
    %1257 = vmatpush1.bf16.msra.mxu0 0
    %1258 = vmatprep.subr.bf16.mxu0 0
    %1259 = vmatpush1.bf16.msra.mxu0 0
    %1260 = vmatprep.subr.bf16.mxu0 0
    %1261 = vmatpush1.bf16.msra.mxu0 0
    %1262 = vmatprep.mubr.bf16.mxu0 0
    %1263 = vmatmul.mubr.bf16.gmra.mrb[0].mxu0 %v1058
    %v1264 = vpop.f32.mrb[0].mxu0
    %v1265 = vadd.f32 0.0, %v1264
    %v1266 = vpop.f32.mrb[0].mxu0
    %v1267 = vadd.f32 0.0, %v1266
    %v1268 = vpop.f32.mrb[0].mxu0
    %v1269 = vadd.f32 0.0, %v1268
    %v1270 = vpop.f32.mrb[0].mxu0
    %v1271 = vadd.f32 0.0, %v1270
    %1272 = vmatprep.mubr.bf16.mxu0 0
    %1273 = vmatmul.mubr.bf16.gmra.mrb[0].mxu0 %v1059
    %v1274 = vpop.f32.mrb[0].mxu0
    %v1275 = vadd.f32 0.0, %v1274
    %v1276 = vpop.f32.mrb[0].mxu0
    %v1277 = vadd.f32 0.0, %v1276
    %v1278 = vpop.f32.mrb[0].mxu0
    %v1279 = vadd.f32 0.0, %v1278
    %v1280 = vpop.f32.mrb[0].mxu0
    %v1281 = vadd.f32 0.0, %v1280
    %1282 = vdwg.mxu0
    %1283 = vmatprep.subr.bf16.mxu0 %v1067
    %1284 = vmatpush1.bf16.msra.mxu0 %v1066
    %1285 = vmatprep.subr.bf16.mxu0 %v1075
    %1286 = vmatpush1.bf16.msra.mxu0 %v1074
    %1287 = vmatprep.subr.bf16.mxu0 %v1083
    %1288 = vmatpush1.bf16.msra.mxu0 %v1082
    %1289 = vmatprep.subr.bf16.mxu0 %v1091
    %1290 = vmatpush1.bf16.msra.mxu0 %v1090
    %1291 = vmatprep.subr.bf16.mxu0 %v1099
    %1292 = vmatpush1.bf16.msra.mxu0 %v1098
    %1293 = vmatprep.subr.bf16.mxu0 %v1107
    %1294 = vmatpush1.bf16.msra.mxu0 %v1106
    %1295 = vmatprep.subr.bf16.mxu0 %v1115
    %1296 = vmatpush1.bf16.msra.mxu0 %v1114
    %1297 = vmatprep.subr.bf16.mxu0 %v1123
    %1298 = vmatpush1.bf16.msra.mxu0 %v1122
    %1299 = vmatprep.subr.bf16.mxu0 0
    %1300 = vmatpush1.bf16.msra.mxu0 0
    %1301 = vmatprep.subr.bf16.mxu0 0
    %1302 = vmatpush1.bf16.msra.mxu0 0
    %1303 = vmatprep.subr.bf16.mxu0 0
    %1304 = vmatpush1.bf16.msra.mxu0 0
    %1305 = vmatprep.subr.bf16.mxu0 0
    %1306 = vmatpush1.bf16.msra.mxu0 0
    %1307 = vmatprep.subr.bf16.mxu0 0
    %1308 = vmatpush1.bf16.msra.mxu0 0
    %1309 = vmatprep.subr.bf16.mxu0 0
    %1310 = vmatpush1.bf16.msra.mxu0 0
    %1311 = vmatprep.subr.bf16.mxu0 0
    %1312 = vmatpush1.bf16.msra.mxu0 0
    %1313 = vmatprep.subr.bf16.mxu0 0
    %1314 = vmatpush1.bf16.msra.mxu0 0
    %1315 = vmatprep.mubr.bf16.mxu0 0
    %1316 = vmatmul.mubr.bf16.gmra.mrb[0].mxu0 %v1058
    %v1317 = vpop.f32.mrb[0].mxu0
    %v1318 = vadd.f32 0.0, %v1317
    %v1319 = vpop.f32.mrb[0].mxu0
    %v1320 = vadd.f32 0.0, %v1319
    %v1321 = vpop.f32.mrb[0].mxu0
    %v1322 = vadd.f32 0.0, %v1321
    %v1323 = vpop.f32.mrb[0].mxu0
    %v1324 = vadd.f32 0.0, %v1323
    %1325 = vmatprep.mubr.bf16.mxu0 0
    %1326 = vmatmul.mubr.bf16.gmra.mrb[0].mxu0 %v1059
    %v1327 = vpop.f32.mrb[0].mxu0
    %v1328 = vadd.f32 0.0, %v1327
    %v1329 = vpop.f32.mrb[0].mxu0
    %v1330 = vadd.f32 0.0, %v1329
    %v1331 = vpop.f32.mrb[0].mxu0
    %v1332 = vadd.f32 0.0, %v1331
    %v1333 = vpop.f32.mrb[0].mxu0
    %v1334 = vadd.f32 0.0, %v1333
    %1335 = vdwg.mxu0
    %v1336 = vsub.f32 0.0, %v1159
    %v1337 = vsub.f32 0.0, %v1161
    %v1338 = vsub.f32 0.0, %v1212
    %v1339 = vsub.f32 0.0, %v1214
    %v1340 = vsub.f32 0.0, %v1163
    %v1341 = vsub.f32 0.0, %v1165
    %v1342 = vsub.f32 0.0, %v1216
    %v1343 = vsub.f32 0.0, %v1218
    %v1344 = vsub.f32 0.0, %v1169
    %v1345 = vsub.f32 0.0, %v1171
    %v1346 = vsub.f32 0.0, %v1222
    %v1347 = vsub.f32 0.0, %v1224
    %v1348 = vsub.f32 0.0, %v1173
    %v1349 = vsub.f32 0.0, %v1175
    %v1350 = vsub.f32 0.0, %v1226
    %v1351 = vsub.f32 0.0, %v1228
    %v1352 = vmul.f32 %v1336, 1.442695
    %v1353 = vpow.pop %v1352
    %v1354 = vmul.f32 %v1337, 1.442695
    %v1355 = vpow.pop %v1354
    %v1356 = vmul.f32 %v1338, 1.442695
    %v1357 = vpow.pop %v1356
    %v1358 = vmul.f32 %v1339, 1.442695
    %v1359 = vpow.pop %v1358
    %v1360 = vmul.f32 %v1340, 1.442695
    %v1361 = vpow.pop %v1360
    %v1362 = vmul.f32 %v1341, 1.442695
    %v1363 = vpow.pop %v1362
    %v1364 = vmul.f32 %v1342, 1.442695
    %v1365 = vpow.pop %v1364
    %v1366 = vmul.f32 %v1343, 1.442695
    %v1367 = vpow.pop %v1366
    %v1368 = vmul.f32 %v1344, 1.442695
    %v1369 = vpow.pop %v1368
    %v1370 = vmul.f32 %v1345, 1.442695
    %v1371 = vpow.pop %v1370
    %v1372 = vmul.f32 %v1346, 1.442695
    %v1373 = vpow.pop %v1372
    %v1374 = vmul.f32 %v1347, 1.442695
    %v1375 = vpow.pop %v1374
    %v1376 = vmul.f32 %v1348, 1.442695
    %v1377 = vpow.pop %v1376
    %v1378 = vmul.f32 %v1349, 1.442695
    %v1379 = vpow.pop %v1378
    %v1380 = vmul.f32 %v1350, 1.442695
    %v1381 = vpow.pop %v1380
    %v1382 = vmul.f32 %v1351, 1.442695
    %v1383 = vpow.pop %v1382
    %v1384 = vadd.f32 %v1353, 1.0
    %v1385 = vadd.f32 %v1355, 1.0
    %v1386 = vadd.f32 %v1357, 1.0
    %v1387 = vadd.f32 %v1359, 1.0
    %v1388 = vadd.f32 %v1361, 1.0
    %v1389 = vadd.f32 %v1363, 1.0
    %v1390 = vadd.f32 %v1365, 1.0
    %v1391 = vadd.f32 %v1367, 1.0
    %v1392 = vadd.f32 %v1369, 1.0
    %v1393 = vadd.f32 %v1371, 1.0
    %v1394 = vadd.f32 %v1373, 1.0
    %v1395 = vadd.f32 %v1375, 1.0
    %v1396 = vadd.f32 %v1377, 1.0
    %v1397 = vadd.f32 %v1379, 1.0
    %v1398 = vadd.f32 %v1381, 1.0
    %v1399 = vadd.f32 %v1383, 1.0
    %v1400 = vrcp.pop %v1384
    %v1401 = vmul.f32 %v1159, %v1400
    %v1402 = vrcp.pop %v1385
    %v1403 = vmul.f32 %v1161, %v1402
    %v1404 = vrcp.pop %v1386
    %v1405 = vmul.f32 %v1212, %v1404
    %v1406 = vrcp.pop %v1387
    %v1407 = vmul.f32 %v1214, %v1406
    %v1408 = vrcp.pop %v1388
    %v1409 = vmul.f32 %v1163, %v1408
    %v1410 = vrcp.pop %v1389
    %v1411 = vmul.f32 %v1165, %v1410
    %v1412 = vrcp.pop %v1390
    %v1413 = vmul.f32 %v1216, %v1412
    %v1414 = vrcp.pop %v1391
    %v1415 = vmul.f32 %v1218, %v1414
    %v1416 = vrcp.pop %v1392
    %v1417 = vmul.f32 %v1169, %v1416
    %v1418 = vrcp.pop %v1393
    %v1419 = vmul.f32 %v1171, %v1418
    %v1420 = vrcp.pop %v1394
    %v1421 = vmul.f32 %v1222, %v1420
    %v1422 = vrcp.pop %v1395
    %v1423 = vmul.f32 %v1224, %v1422
    %v1424 = vrcp.pop %v1396
    %v1425 = vmul.f32 %v1173, %v1424
    %v1426 = vrcp.pop %v1397
    %v1427 = vmul.f32 %v1175, %v1426
    %v1428 = vrcp.pop %v1398
    %v1429 = vmul.f32 %v1226, %v1428
    %v1430 = vrcp.pop %v1399
    %v1431 = vmul.f32 %v1228, %v1430
    %s1432 = smul.u32 4, 64
    %s1433 = smul.u32 %s1432, 1
    %s1434 = sshll.u32 %s1433, 4
    %1435 = dma.done %s145, %s1434
    %v1436 = vmul.f32 %v1401, %v1265
    %v1437 = vmul.f32 %v1403, %v1267
    %v1438 = vmul.f32 %v1405, %v1318
    %v1439 = vmul.f32 %v1407, %v1320
    %v1440 = vmul.f32 %v1409, %v1269
    %v1441 = vmul.f32 %v1411, %v1271
    %v1442 = vmul.f32 %v1413, %v1322
    %v1443 = vmul.f32 %v1415, %v1324
    %v1444 = vmul.f32 %v1417, %v1275
    %v1445 = vmul.f32 %v1419, %v1277
    %v1446 = vmul.f32 %v1421, %v1328
    %v1447 = vmul.f32 %v1423, %v1330
    %v1448 = vmul.f32 %v1425, %v1279
    %v1449 = vmul.f32 %v1427, %v1281
    %v1450 = vmul.f32 %v1429, %v1332
    %v1451 = vmul.f32 %v1431, %v1334
    %v1452 = vpack.c.bf16 %v1440, %v1436
    %v1453 = vpack.c.bf16 %v1441, %v1437
    %v1454 = vpack.c.bf16 %v1442, %v1438
    %v1455 = vpack.c.bf16 %v1443, %v1439
    %v1456 = vpack.c.bf16 %v1448, %v1444
    %v1457 = vpack.c.bf16 %v1449, %v1445
    %v1458 = vpack.c.bf16 %v1450, %v1446
    %v1459 = vpack.c.bf16 %v1451, %v1447
    %v1460 = vld [vmem:[#allocation3] sm:$0xff]
    %v1461 = vld [vmem:[#allocation3 + $0x8] sm:$0xff]
    %v1462 = vld [vmem:[#allocation3 + $0x10] sm:$0xff]
    %v1463 = vld [vmem:[#allocation3 + $0x18] sm:$0xff]
    %v1464 = vld [vmem:[#allocation3 + $0x20] sm:$0xff]
    %v1465 = vld [vmem:[#allocation3 + $0x28] sm:$0xff]
    %v1466 = vld [vmem:[#allocation3 + $0x30] sm:$0xff]
    %v1467 = vld [vmem:[#allocation3 + $0x38] sm:$0xff]
    %v1468 = vld [vmem:[#allocation3 + $0x40] sm:$0xff]
    %v1469 = vld [vmem:[#allocation3 + $0x48] sm:$0xff]
    %v1470 = vld [vmem:[#allocation3 + $0x50] sm:$0xff]
    %v1471 = vld [vmem:[#allocation3 + $0x58] sm:$0xff]
    %v1472 = vld [vmem:[#allocation3 + $0x60] sm:$0xff]
    %v1473 = vld [vmem:[#allocation3 + $0x68] sm:$0xff]
    %v1474 = vld [vmem:[#allocation3 + $0x70] sm:$0xff]
    %v1475 = vld [vmem:[#allocation3 + $0x78] sm:$0xff]
    %v1476 = vld [vmem:[#allocation3 + $0x80] sm:$0xff]
    %v1477 = vld [vmem:[#allocation3 + $0x88] sm:$0xff]
    %v1478 = vld [vmem:[#allocation3 + $0x90] sm:$0xff]
    %v1479 = vld [vmem:[#allocation3 + $0x98] sm:$0xff]
    %v1480 = vld [vmem:[#allocation3 + $0xa0] sm:$0xff]
    %v1481 = vld [vmem:[#allocation3 + $0xa8] sm:$0xff]
    %v1482 = vld [vmem:[#allocation3 + $0xb0] sm:$0xff]
    %v1483 = vld [vmem:[#allocation3 + $0xb8] sm:$0xff]
    %v1484 = vld [vmem:[#allocation3 + $0xc0] sm:$0xff]
    %v1485 = vld [vmem:[#allocation3 + $0xc8] sm:$0xff]
    %v1486 = vld [vmem:[#allocation3 + $0xd0] sm:$0xff]
    %v1487 = vld [vmem:[#allocation3 + $0xd8] sm:$0xff]
    %v1488 = vld [vmem:[#allocation3 + $0xe0] sm:$0xff]
    %v1489 = vld [vmem:[#allocation3 + $0xe8] sm:$0xff]
    %v1490 = vld [vmem:[#allocation3 + $0xf0] sm:$0xff]
    %v1491 = vld [vmem:[#allocation3 + $0xf8] sm:$0xff]
    %1492 = vmatprep.subr.bf16.mxu0 0
    %1493 = vmatpush1.bf16.msra.mxu0 %v1460
    %1494 = vmatprep.subr.bf16.mxu0 0
    %1495 = vmatpush1.bf16.msra.mxu0 %v1461
    %1496 = vmatprep.subr.bf16.mxu0 0
    %1497 = vmatpush1.bf16.msra.mxu0 %v1462
    %1498 = vmatprep.subr.bf16.mxu0 0
    %1499 = vmatpush1.bf16.msra.mxu0 %v1463
    %1500 = vmatprep.subr.bf16.mxu0 0
    %1501 = vmatpush1.bf16.msra.mxu0 %v1464
    %1502 = vmatprep.subr.bf16.mxu0 0
    %1503 = vmatpush1.bf16.msra.mxu0 %v1465
    %1504 = vmatprep.subr.bf16.mxu0 0
    %1505 = vmatpush1.bf16.msra.mxu0 %v1466
    %1506 = vmatprep.subr.bf16.mxu0 0
    %1507 = vmatpush1.bf16.msra.mxu0 %v1467
    %1508 = vmatprep.subr.bf16.mxu0 0
    %1509 = vmatpush1.bf16.msra.mxu0 %v1468
    %1510 = vmatprep.subr.bf16.mxu0 0
    %1511 = vmatpush1.bf16.msra.mxu0 %v1469
    %1512 = vmatprep.subr.bf16.mxu0 0
    %1513 = vmatpush1.bf16.msra.mxu0 %v1470
    %1514 = vmatprep.subr.bf16.mxu0 0
    %1515 = vmatpush1.bf16.msra.mxu0 %v1471
    %1516 = vmatprep.subr.bf16.mxu0 0
    %1517 = vmatpush1.bf16.msra.mxu0 %v1472
    %1518 = vmatprep.subr.bf16.mxu0 0
    %1519 = vmatpush1.bf16.msra.mxu0 %v1473
    %1520 = vmatprep.subr.bf16.mxu0 0
    %1521 = vmatpush1.bf16.msra.mxu0 %v1474
    %1522 = vmatprep.subr.bf16.mxu0 0
    %1523 = vmatpush1.bf16.msra.mxu0 %v1475
    %1524 = vmatprep.mubr.bf16.mxu0 %v1453
    %1525 = vmatmul.mubr.bf16.gmra.mrb[0].mxu0 %v1452
    %v1526 = vpop.f32.mrb[0].mxu0
    %v1527 = vadd.f32 0.0, %v1526
    %v1528 = vpop.f32.mrb[0].mxu0
    %v1529 = vpop.f32.mrb[0].mxu0
    %v1530 = vadd.f32 0.0, %v1529
    %v1531 = vpop.f32.mrb[0].mxu0
    %1532 = vmatprep.mubr.bf16.mxu0 %v1457
    %1533 = vmatmul.mubr.bf16.gmra.mrb[0].mxu0 %v1456
    %v1534 = vpop.f32.mrb[0].mxu0
    %v1535 = vadd.f32 0.0, %v1534
    %v1536 = vpop.f32.mrb[0].mxu0
    %v1537 = vpop.f32.mrb[0].mxu0
    %v1538 = vadd.f32 0.0, %v1537
    %v1539 = vpop.f32.mrb[0].mxu0
    %1540 = vdwg.mxu0
    %1541 = vmatprep.subr.bf16.mxu0 0
    %1542 = vmatpush1.bf16.msra.mxu0 %v1476
    %1543 = vmatprep.subr.bf16.mxu0 0
    %1544 = vmatpush1.bf16.msra.mxu0 %v1477
    %1545 = vmatprep.subr.bf16.mxu0 0
    %1546 = vmatpush1.bf16.msra.mxu0 %v1478
    %1547 = vmatprep.subr.bf16.mxu0 0
    %1548 = vmatpush1.bf16.msra.mxu0 %v1479
    %1549 = vmatprep.subr.bf16.mxu0 0
    %1550 = vmatpush1.bf16.msra.mxu0 %v1480
    %1551 = vmatprep.subr.bf16.mxu0 0
    %1552 = vmatpush1.bf16.msra.mxu0 %v1481
    %1553 = vmatprep.subr.bf16.mxu0 0
    %1554 = vmatpush1.bf16.msra.mxu0 %v1482
    %1555 = vmatprep.subr.bf16.mxu0 0
    %1556 = vmatpush1.bf16.msra.mxu0 %v1483
    %1557 = vmatprep.subr.bf16.mxu0 0
    %1558 = vmatpush1.bf16.msra.mxu0 %v1484
    %1559 = vmatprep.subr.bf16.mxu0 0
    %1560 = vmatpush1.bf16.msra.mxu0 %v1485
    %1561 = vmatprep.subr.bf16.mxu0 0
    %1562 = vmatpush1.bf16.msra.mxu0 %v1486
    %1563 = vmatprep.subr.bf16.mxu0 0
    %1564 = vmatpush1.bf16.msra.mxu0 %v1487
    %1565 = vmatprep.subr.bf16.mxu0 0
    %1566 = vmatpush1.bf16.msra.mxu0 %v1488
    %1567 = vmatprep.subr.bf16.mxu0 0
    %1568 = vmatpush1.bf16.msra.mxu0 %v1489
    %1569 = vmatprep.subr.bf16.mxu0 0
    %1570 = vmatpush1.bf16.msra.mxu0 %v1490
    %1571 = vmatprep.subr.bf16.mxu0 0
    %1572 = vmatpush1.bf16.msra.mxu0 %v1491
    %1573 = vmatprep.mubr.bf16.mxu0 %v1455
    %1574 = vmatmul.mubr.bf16.gmra.mrb[0].mxu0 %v1454
    %v1575 = vpop.f32.mrb[0].mxu0
    %v1576 = vadd.f32 %v1527, %v1575
    %v1577 = vpop.f32.mrb[0].mxu0
    %v1578 = vpop.f32.mrb[0].mxu0
    %v1579 = vadd.f32 %v1530, %v1578
    %v1580 = vpop.f32.mrb[0].mxu0
    %1581 = vmatprep.mubr.bf16.mxu0 %v1459
    %1582 = vmatmul.mubr.bf16.gmra.mrb[0].mxu0 %v1458
    %v1583 = vpop.f32.mrb[0].mxu0
    %v1584 = vadd.f32 %v1535, %v1583
    %v1585 = vpop.f32.mrb[0].mxu0
    %v1586 = vpop.f32.mrb[0].mxu0
    %v1587 = vadd.f32 %v1538, %v1586
    %v1588 = vpop.f32.mrb[0].mxu0
    %1589 = vdwg.mxu0
    %v1590 = vadd.f32 %v1050, %v1576
    %v1591 = vadd.f32 %v1051, %v1579
    %v1592 = vadd.f32 %v1052, %v1584
    %v1593 = vadd.f32 %v1053, %v1587
    %v1594 = vadd.f32 %v1590, %v1591
    %v1595 = vrot.slane %v1594, 4
    %v1596 = vadd.f32 %v1594, %v1595
    %v1597 = vrot.slane %v1596, 2
    %v1598 = vadd.f32 %v1596, %v1597
    %v1599 = vrot.slane %v1598, 1
    %v1600 = vadd.f32 %v1598, %v1599
    %v1601 = vadd.f32 %v1592, %v1593
    %v1602 = vrot.slane %v1601, 4
    %v1603 = vadd.f32 %v1601, %v1602
    %v1604 = vrot.slane %v1603, 2
    %v1605 = vadd.f32 %v1603, %v1604
    %v1606 = vrot.slane %v1605, 1
    %v1607 = vadd.f32 %v1605, %v1606
    %v1608 = vmul.f32 %v1600, %v997
    %v1609 = vmul.f32 %v1607, %v997
    %v1610 = vsub.f32 %v1590, %v1608
    %v1611 = vsub.f32 %v1591, %v1608
    %v1612 = vsub.f32 %v1592, %v1609
    %v1613 = vsub.f32 %v1593, %v1609
    %v1614 = vmul.f32 %v1610, %v1610
    %v1615 = vmul.f32 %v1611, %v1611
    %v1616 = vmul.f32 %v1612, %v1612
    %v1617 = vmul.f32 %v1613, %v1613
    %v1618 = vadd.f32 %v1614, %v1615
    %v1619 = vrot.slane %v1618, 4
    %v1620 = vadd.f32 %v1618, %v1619
    %v1621 = vrot.slane %v1620, 2
    %v1622 = vadd.f32 %v1620, %v1621
    %v1623 = vrot.slane %v1622, 1
    %v1624 = vadd.f32 %v1622, %v1623
    %v1625 = vadd.f32 %v1616, %v1617
    %v1626 = vrot.slane %v1625, 4
    %v1627 = vadd.f32 %v1625, %v1626
    %v1628 = vrot.slane %v1627, 2
    %v1629 = vadd.f32 %v1627, %v1628
    %v1630 = vrot.slane %v1629, 1
    %v1631 = vadd.f32 %v1629, %v1630
    %v1632 = vmul.f32 %v1624, %v997
    %v1633 = vmul.f32 %v1631, %v997
    %v1634 = vadd.f32 %v1632, 1e-05
    %v1635 = vadd.f32 %v1633, 1e-05
    %v1636 = vrsqrt.pop %v1634
    %v1637 = vrsqrt.pop %v1635
    %v1638 = vmul.f32 %v1610, %v1636
    %v1639 = vmul.f32 %v1611, %v1636
    %v1640 = vmul.f32 %v1612, %v1637
    %v1641 = vmul.f32 %v1613, %v1637
    %v1642 = vld [vmem:[%s9] sm:$0x1]
    %v1644 = vlaneseq
    %v1645 = vshrl.u32 %v1644, 7
    %v1646 = vsub.s32 0, %v1645
    %v1647 = vrot.slane %v1642, %v1646
    %v1649 = vmul.f32 %v1638, %v1647
    %v1650 = vmul.f32 %v1639, %v1647
    %v1651 = vmul.f32 %v1640, %v1647
    %v1652 = vmul.f32 %v1641, %v1647
    %v1653 = vld [vmem:[%s10] sm:$0x1]
    %v1655 = vlaneseq
    %v1656 = vshrl.u32 %v1655, 7
    %v1657 = vsub.s32 0, %v1656
    %v1658 = vrot.slane %v1653, %v1657
    %v1660 = vadd.f32 %v1649, %v1658
    %v1661 = vadd.f32 %v1650, %v1658
    %v1662 = vadd.f32 %v1651, %v1658
    %v1663 = vadd.f32 %v1652, %v1658
    %1664 = vst [vmem:[#allocation14] sm:$0xff] %v1660
    %1665 = vst [vmem:[#allocation14 + $0x8] sm:$0xff] %v1661
    %1666 = vst [vmem:[#allocation14 + $0x10] sm:$0xff] %v1662
    %1667 = vst [vmem:[#allocation14 + $0x18] sm:$0xff] %v1663
    // Predicated region
    $region70: #{tpu_custom_call.1} parent=1 // pred_check
      _
    $region71: #{tpu_custom_call.1} parent=1 // pred_check_branch
      %1669 = sbr.rel (0) target = $region73
    $region72: #{tpu_custom_call.1} parent=1 // pred_region
      %s1671 = ssub.s32 512, 512
      %1672 = vsyncadd [#allocation7], %s1671
      %s1673 = sshll.u32 [#allocation14], 4
      %s1674 = int_to_ptr.vmem [resolvable:$true] %s1673
      %1679 = dma.vmem_to_hbm [thread:$0]  %s1674, 512, %s13, [#allocation7], 128, 128, 8
    $region73: #{tpu_custom_call.1} parent=1 // pred_fallthru
      _
    // Predicated region
    $region74: #{tpu_custom_call.1} parent=1 // pred_check
      _
    $region75: #{tpu_custom_call.1} parent=1 // pred_check_branch
      %1681 = sbr.rel (0) target = $region77
    $region76: #{tpu_custom_call.1} parent=1 // pred_region
      %1682 = dma.done [#allocation7], 512
    $region77: #{tpu_custom_call.1} parent=1 // pred_fallthru
      _
    %1683 = vsyncpa [#allocation6], 1
    %1684 = vsyncpa [#allocation9], 1
    %1685 = vsyncpa [#allocation12], 1
    %1686 = vsyncpa [#allocation7], 1
  %1687 = vsyncmov [#allocation4]
  %s1688 = vpop.sfrf %1687
  %p1689 = scmp.eq.s32.totalorder %s1688, 0
  %p1690 = pneg %p1689
  %1692 = shalt.err (%p1690)
  %s1693 = scalar_lea.sflag [#allocation4], 1
  %1694 = vsyncmov %s1693
  %s1695 = vpop.sfrf %1694
  %p1696 = scmp.eq.s32.totalorder %s1695, 0
  %p1697 = pneg %p1696
  %1699 = shalt.err (%p1697)

</llo_original>
